<compile_context>
chip_gen: v6e
topology: v6e:2x2x1
jax: 0.10.0
libtpu: 0.0.40
codegen_flags: <defaults>
</compile_context>

<pallas_src>
import functools

import jax
import jax.numpy as jnp
from jax.experimental import pallas as pl
from jax.experimental.pallas import tpu as pltpu

EPS = 1e-5
# Set to jnp.bfloat16 for 2x MXU throughput (at reduced matmul precision).
MATMUL_DTYPE = jnp.float32


def basic_block_kernel(x_ref, bw1_ref, bw2_ref, sup_ref, sdn_ref, gmat_ref,
                       g1_ref, b1_ref, g2_ref, b2_ref, out_ref, *, W):
    """Fused conv3x3 -> BN -> ReLU -> conv3x3 -> BN -> +residual -> ReLU.

    x_ref    : (N*H, W*C) f32   lane-packed NHWC activations
    bw*_ref  : (3, W*C, W*C)    block-banded conv weights, one slab per dy
    sup_ref  : (N*H, N*H)       "row above" shift matrix (image-boundary aware)
    sdn_ref  : (N*H, N*H)       "row below" shift matrix (image-boundary aware)
    gmat_ref : (W*C, W*C)       channel-grouping matrix (1 where lane%C match)
    g*/b*    : (1, W*C)         BN gamma/beta tiled across the W groups
    out_ref  : (N*H, W*C)
    """
    NH, WC = x_ref.shape
    inv_count = 1.0 / (NH * W)           # 1 / (N*H*W): BN batch-stat normalizer

    x = x_ref[...]

    def mm(a, b):
        return jnp.dot(a.astype(MATMUL_DTYPE), b.astype(MATMUL_DTYPE),
                       preferred_element_type=jnp.float32)

    def conv3x3(inp, bw_ref):
        # dy=0 tap reads the row above, dy=2 the row below (zero at the H edges
        # of each image, encoded in sup/sdn); dx taps and the W-edge zero
        # padding are folded into the banded weight matrices.
        up = mm(sup_ref[...], inp)        # up[r]   = inp[r-1] (0 at image top)
        down = mm(sdn_ref[...], inp)      # down[r] = inp[r+1] (0 at image bot)
        acc = mm(up, bw_ref[0])
        acc += mm(inp, bw_ref[1])
        acc += mm(down, bw_ref[2])
        return acc                        # f32 (NH, WC)

    def batchnorm(acc, g_ref, b_ref):
        # One pass over the data: row sums and row sums-of-squares, then a tiny
        # matmul with G both sums over the W groups and broadcasts the result
        # back to every (w, c) lane.  var = E[x^2] - mu^2 (biased, training).
        s = jnp.sum(acc, axis=0, keepdims=True)            # (1, WC)
        sq = jnp.sum(acc * acc, axis=0, keepdims=True)     # (1, WC)
        mu = jnp.dot(s, gmat_ref[...],
                     preferred_element_type=jnp.float32) * inv_count
        ex2 = jnp.dot(sq, gmat_ref[...],
                      preferred_element_type=jnp.float32) * inv_count
        var = ex2 - mu * mu
        scale = jax.lax.rsqrt(var + EPS) * g_ref[...]
        return (acc - mu) * scale + b_ref[...]

    y1 = jnp.maximum(batchnorm(conv3x3(x, bw1_ref), g1_ref, b1_ref), 0.0)
    y2 = batchnorm(conv3x3(y1, bw2_ref), g2_ref, b2_ref)
    out_ref[...] = jnp.maximum(y2 + x, 0.0).astype(out_ref.dtype)


def _banded_conv_weights(w_oihw, W, dtype):
    """OIHW 3x3 weights -> (3, W*Cin, W*Cout) block-banded matrices (per dy).

    B[dy][win*Cin + ci, wout*Cout + co] = w[co, ci, dy, win - wout + 1]
    (zero when |win - wout| > 1), so `x_packed @ B[dy]` applies all dx taps of
    the row at vertical offset dy, including the W-edge zero padding.
    """
    Cout, Cin, KH, KW = w_oihw.shape
    wt = jnp.transpose(w_oihw, (2, 3, 1, 0)).astype(jnp.float32)   # (KH,KW,Ci,Co)
    win = jnp.arange(W)[:, None]
    wout = jnp.arange(W)[None, :]
    dx = win - wout + (KW // 2)                                    # (W, W)
    valid = ((dx >= 0) & (dx < KW)).astype(jnp.float32)
    taps = jnp.take(wt, jnp.clip(dx, 0, KW - 1), axis=1)           # (KH,W,W,Ci,Co)
    taps = taps * valid[None, :, :, None, None]
    taps = jnp.transpose(taps, (0, 1, 3, 2, 4))                    # (KH,Win,Ci,Wout,Co)
    return taps.reshape(KH, W * Cin, W * Cout).astype(dtype)


def basic_block_pallas(x_nchw, w1_oihw, g1, b1, w2_oihw, g2, b2):
    """x: (N, C, H, W) NCHW; conv weights in PyTorch OIHW; returns NCHW."""
    N, C, H, W = x_nchw.shape
    NH, WC = N * H, W * C

    # NCHW -> lane-packed (N*H, W*C).  No explicit spatial padding needed.
    x_packed = jnp.transpose(x_nchw, (0, 2, 3, 1)).reshape(NH, WC)
    x_packed = x_packed.astype(jnp.float32)

    bw1 = _banded_conv_weights(w1_oihw, W, MATMUL_DTYPE)
    bw2 = _banded_conv_weights(w2_oihw, W, MATMUL_DTYPE)

    # H-shift matrices with the per-image zero boundary rows baked in.
    r = jnp.arange(NH)
    sup = ((r[:, None] - 1 == r[None, :]) &
           (r[:, None] % H != 0)).astype(MATMUL_DTYPE)        # up[r] = x[r-1]
    sdn = ((r[:, None] + 1 == r[None, :]) &
           (r[:, None] % H != H - 1)).astype(MATMUL_DTYPE)    # dn[r] = x[r+1]

    # Channel-grouping matrix: (s @ G)[w*C + c] = sum_w' s[w'*C + c].
    lane = jnp.arange(WC)
    gmat = (lane[:, None] % C == lane[None, :] % C).astype(jnp.float32)

    def pack_vec(v):
        return jnp.tile(v.astype(jnp.float32), W).reshape(1, WC)

    args = (x_packed, bw1, bw2, sup, sdn, gmat,
            pack_vec(g1), pack_vec(b1), pack_vec(g2), pack_vec(b2))

    # Explicit scoped-VMEM limit sized to the resident working set (+headroom).
    arg_bytes = sum(int(a.size) * a.dtype.itemsize for a in args)
    out_bytes = NH * WC * 4
    vmem_limit = int(min(96 * 1024 * 1024,
                         max(4 * 1024 * 1024, 8 * (arg_bytes + out_bytes))))

    vmem = pl.BlockSpec(memory_space=pltpu.MemorySpace.VMEM)
    out_packed = pl.pallas_call(
        functools.partial(basic_block_kernel, W=W),
        out_shape=jax.ShapeDtypeStruct((NH, WC), jnp.float32),
        in_specs=[vmem] * len(args),
        out_specs=vmem,
        compiler_params=pltpu.CompilerParams(vmem_limit_bytes=vmem_limit),
    )(*args)

    return jnp.transpose(out_packed.reshape(N, H, W, C), (0, 3, 1, 2))


def basic_block_reference(x_nchw, w1_oihw, g1, b1, w2_oihw, g2, b2):
    """Pure-JAX reference mirroring the PyTorch forward (training-mode BN)."""
    def conv(x, w):
        return jax.lax.conv_general_dilated(
            x, w, window_strides=(1, 1), padding=((1, 1), (1, 1)),
            dimension_numbers=("NCHW", "OIHW", "NCHW"),
            precision=jax.lax.Precision.HIGHEST)

    def bn(x, g, b):
        mu = jnp.mean(x, axis=(0, 2, 3), keepdims=True)
        var = jnp.mean((x - mu) ** 2, axis=(0, 2, 3), keepdims=True)
        return ((x - mu) * jax.lax.rsqrt(var + EPS)
                * g[None, :, None, None] + b[None, :, None, None])

    out = jax.nn.relu(bn(conv(x_nchw, w1_oihw), g1, b1))
    out = bn(conv(out, w2_oihw), g2, b2)
    return jax.nn.relu(out + x_nchw)


if __name__ == "__main__":
    # inplanes == planes, stride = 1, downsample = None; W*C = 128 (lane-dense).
    N, C, H, W = 2, 8, 16, 16

    key = jax.random.PRNGKey(0)
    k = jax.random.split(key, 7)
    x = jax.random.normal(k[0], (N, C, H, W), jnp.float32)
    w1 = 0.1 * jax.random.normal(k[1], (C, C, 3, 3), jnp.float32)   # OIHW
    w2 = 0.1 * jax.random.normal(k[2], (C, C, 3, 3), jnp.float32)   # OIHW
    g1 = 1.0 + 0.1 * jax.random.normal(k[3], (C,), jnp.float32)
    b1 = 0.1 * jax.random.normal(k[4], (C,), jnp.float32)
    g2 = 1.0 + 0.1 * jax.random.normal(k[5], (C,), jnp.float32)
    b2 = 0.1 * jax.random.normal(k[6], (C,), jnp.float32)

    out = jax.block_until_ready(basic_block_pallas(x, w1, g1, b1, w2, g2, b2))
    ref = jax.block_until_ready(basic_block_reference(x, w1, g1, b1, w2, g2, b2))

    assert out.shape == (N, C, H, W)
    max_err = jnp.max(jnp.abs(out - ref))
    assert jnp.allclose(out, ref, atol=1e-3, rtol=1e-3), (
        f"max abs err = {max_err}")

    print("KERNEL_OK")
</pallas_src>

<mosaic_0001>
module attributes {stable_mosaic.version = 11 : i64} {
  func.func @basic_block_kernel(%arg0: memref<32x128xf32, #tpu.memory_space<vmem>>, %arg1: memref<3x128x128xf32, #tpu.memory_space<vmem>>, %arg2: memref<3x128x128xf32, #tpu.memory_space<vmem>>, %arg3: memref<32x32xf32, #tpu.memory_space<vmem>>, %arg4: memref<32x32xf32, #tpu.memory_space<vmem>>, %arg5: memref<128x128xf32, #tpu.memory_space<vmem>>, %arg6: memref<1x128xf32, #tpu.memory_space<vmem>>, %arg7: memref<1x128xf32, #tpu.memory_space<vmem>>, %arg8: memref<1x128xf32, #tpu.memory_space<vmem>>, %arg9: memref<1x128xf32, #tpu.memory_space<vmem>>, %arg10: memref<32x128xf32, #tpu.memory_space<vmem>>) attributes {dimension_semantics = [], scalar_prefetch = 0 : i64, scratch_operands = 0 : i64, tpu.core_type = #tpu.core_type<tc>} {
    %c0 = arith.constant 0 : index
    %c0_0 = arith.constant 0 : index
    %0 = vector.load %arg0[%c0, %c0_0] : memref<32x128xf32, #tpu.memory_space<vmem>>, vector<32x128xf32>
    %c0_1 = arith.constant 0 : index
    %c0_2 = arith.constant 0 : index
    %1 = vector.load %arg3[%c0_1, %c0_2] : memref<32x32xf32, #tpu.memory_space<vmem>>, vector<32x32xf32>
    %cst = arith.constant dense<0.000000e+00> : vector<32x128xf32>
    %2 = tpu.matmul %1, %0, %cst {dimension_numbers = #tpu.dot_dimension_numbers<[1], [0], [0], [1], [0, 0, 1, 1], [], []>} : vector<32x32xf32>, vector<32x128xf32>, vector<32x128xf32> -> vector<32x128xf32>
    %c0_3 = arith.constant 0 : index
    %c0_4 = arith.constant 0 : index
    %3 = vector.load %arg4[%c0_3, %c0_4] : memref<32x32xf32, #tpu.memory_space<vmem>>, vector<32x32xf32>
    %cst_5 = arith.constant dense<0.000000e+00> : vector<32x128xf32>
    %4 = tpu.matmul %3, %0, %cst_5 {dimension_numbers = #tpu.dot_dimension_numbers<[1], [0], [0], [1], [0, 0, 1, 1], [], []>} : vector<32x32xf32>, vector<32x128xf32>, vector<32x128xf32> -> vector<32x128xf32>
    %c0_6 = arith.constant 0 : index
    %c0_7 = arith.constant 0 : index
    %c0_8 = arith.constant 0 : index
    %5 = vector.load %arg1[%c0_6, %c0_7, %c0_8] : memref<3x128x128xf32, #tpu.memory_space<vmem>>, vector<1x128x128xf32>
    %6 = vector.shape_cast %5 : vector<1x128x128xf32> to vector<128x128xf32>
    %cst_9 = arith.constant dense<0.000000e+00> : vector<32x128xf32>
    %7 = tpu.matmul %2, %6, %cst_9 {dimension_numbers = #tpu.dot_dimension_numbers<[1], [0], [0], [1], [0, 0, 1, 1], [], []>} : vector<32x128xf32>, vector<128x128xf32>, vector<32x128xf32> -> vector<32x128xf32>
    %c1 = arith.constant 1 : index
    %c0_10 = arith.constant 0 : index
    %c0_11 = arith.constant 0 : index
    %8 = vector.load %arg1[%c1, %c0_10, %c0_11] : memref<3x128x128xf32, #tpu.memory_space<vmem>>, vector<1x128x128xf32>
    %9 = vector.shape_cast %8 : vector<1x128x128xf32> to vector<128x128xf32>
    %cst_12 = arith.constant dense<0.000000e+00> : vector<32x128xf32>
    %10 = tpu.matmul %0, %9, %cst_12 {dimension_numbers = #tpu.dot_dimension_numbers<[1], [0], [0], [1], [0, 0, 1, 1], [], []>} : vector<32x128xf32>, vector<128x128xf32>, vector<32x128xf32> -> vector<32x128xf32>
    %11 = arith.addf %7, %10 : vector<32x128xf32>
    %c2 = arith.constant 2 : index
    %c0_13 = arith.constant 0 : index
    %c0_14 = arith.constant 0 : index
    %12 = vector.load %arg1[%c2, %c0_13, %c0_14] : memref<3x128x128xf32, #tpu.memory_space<vmem>>, vector<1x128x128xf32>
    %13 = vector.shape_cast %12 : vector<1x128x128xf32> to vector<128x128xf32>
    %cst_15 = arith.constant dense<0.000000e+00> : vector<32x128xf32>
    %14 = tpu.matmul %4, %13, %cst_15 {dimension_numbers = #tpu.dot_dimension_numbers<[1], [0], [0], [1], [0, 0, 1, 1], [], []>} : vector<32x128xf32>, vector<128x128xf32>, vector<32x128xf32> -> vector<32x128xf32>
    %15 = arith.addf %11, %14 : vector<32x128xf32>
    %cst_16 = arith.constant dense<0.000000e+00> : vector<128xf32>
    %16 = vector.multi_reduction <add>, %15, %cst_16 [0] : vector<32x128xf32> to vector<128xf32>
    %17 = vector.shape_cast %16 : vector<128xf32> to vector<1x128xf32>
    %18 = arith.mulf %15, %15 : vector<32x128xf32>
    %cst_17 = arith.constant dense<0.000000e+00> : vector<128xf32>
    %19 = vector.multi_reduction <add>, %18, %cst_17 [0] : vector<32x128xf32> to vector<128xf32>
    %20 = vector.shape_cast %19 : vector<128xf32> to vector<1x128xf32>
    %c0_18 = arith.constant 0 : index
    %c0_19 = arith.constant 0 : index
    %21 = vector.load %arg5[%c0_18, %c0_19] : memref<128x128xf32, #tpu.memory_space<vmem>>, vector<128x128xf32>
    %cst_20 = arith.constant dense<0.000000e+00> : vector<1x128xf32>
    %22 = tpu.matmul %17, %21, %cst_20 {dimension_numbers = #tpu.dot_dimension_numbers<[1], [0], [0], [1], [0, 0, 1, 1], [], []>} : vector<1x128xf32>, vector<128x128xf32>, vector<1x128xf32> -> vector<1x128xf32>
    %cst_21 = arith.constant 0.001953125 : f32
    %23 = vector.broadcast %cst_21 : f32 to vector<1x128xf32>
    %24 = arith.mulf %22, %23 : vector<1x128xf32>
    %c0_22 = arith.constant 0 : index
    %c0_23 = arith.constant 0 : index
    %25 = vector.load %arg5[%c0_22, %c0_23] : memref<128x128xf32, #tpu.memory_space<vmem>>, vector<128x128xf32>
    %cst_24 = arith.constant dense<0.000000e+00> : vector<1x128xf32>
    %26 = tpu.matmul %20, %25, %cst_24 {dimension_numbers = #tpu.dot_dimension_numbers<[1], [0], [0], [1], [0, 0, 1, 1], [], []>} : vector<1x128xf32>, vector<128x128xf32>, vector<1x128xf32> -> vector<1x128xf32>
    %cst_25 = arith.constant 0.001953125 : f32
    %27 = vector.broadcast %cst_25 : f32 to vector<1x128xf32>
    %28 = arith.mulf %26, %27 : vector<1x128xf32>
    %29 = arith.mulf %24, %24 : vector<1x128xf32>
    %30 = arith.subf %28, %29 : vector<1x128xf32>
    %cst_26 = arith.constant 9.99999974E-6 : f32
    %31 = vector.broadcast %cst_26 : f32 to vector<1x128xf32>
    %32 = arith.addf %30, %31 : vector<1x128xf32>
    %33 = math.rsqrt %32 : vector<1x128xf32>
    %c0_27 = arith.constant 0 : index
    %c0_28 = arith.constant 0 : index
    %34 = vector.load %arg6[%c0_27, %c0_28] : memref<1x128xf32, #tpu.memory_space<vmem>>, vector<1x128xf32>
    %35 = arith.mulf %33, %34 : vector<1x128xf32>
    %36 = vector.broadcast %24 : vector<1x128xf32> to vector<32x128xf32>
    %37 = arith.subf %15, %36 : vector<32x128xf32>
    %38 = vector.broadcast %35 : vector<1x128xf32> to vector<32x128xf32>
    %39 = arith.mulf %37, %38 : vector<32x128xf32>
    %c0_29 = arith.constant 0 : index
    %c0_30 = arith.constant 0 : index
    %40 = vector.load %arg7[%c0_29, %c0_30] : memref<1x128xf32, #tpu.memory_space<vmem>>, vector<1x128xf32>
    %41 = vector.broadcast %40 : vector<1x128xf32> to vector<32x128xf32>
    %42 = arith.addf %39, %41 : vector<32x128xf32>
    %cst_31 = arith.constant 0.000000e+00 : f32
    %43 = vector.broadcast %cst_31 : f32 to vector<32x128xf32>
    %44 = arith.maximumf %42, %43 : vector<32x128xf32>
    %c0_32 = arith.constant 0 : index
    %c0_33 = arith.constant 0 : index
    %45 = vector.load %arg3[%c0_32, %c0_33] : memref<32x32xf32, #tpu.memory_space<vmem>>, vector<32x32xf32>
    %cst_34 = arith.constant dense<0.000000e+00> : vector<32x128xf32>
    %46 = tpu.matmul %45, %44, %cst_34 {dimension_numbers = #tpu.dot_dimension_numbers<[1], [0], [0], [1], [0, 0, 1, 1], [], []>} : vector<32x32xf32>, vector<32x128xf32>, vector<32x128xf32> -> vector<32x128xf32>
    %c0_35 = arith.constant 0 : index
    %c0_36 = arith.constant 0 : index
    %47 = vector.load %arg4[%c0_35, %c0_36] : memref<32x32xf32, #tpu.memory_space<vmem>>, vector<32x32xf32>
    %cst_37 = arith.constant dense<0.000000e+00> : vector<32x128xf32>
    %48 = tpu.matmul %47, %44, %cst_37 {dimension_numbers = #tpu.dot_dimension_numbers<[1], [0], [0], [1], [0, 0, 1, 1], [], []>} : vector<32x32xf32>, vector<32x128xf32>, vector<32x128xf32> -> vector<32x128xf32>
    %c0_38 = arith.constant 0 : index
    %c0_39 = arith.constant 0 : index
    %c0_40 = arith.constant 0 : index
    %49 = vector.load %arg2[%c0_38, %c0_39, %c0_40] : memref<3x128x128xf32, #tpu.memory_space<vmem>>, vector<1x128x128xf32>
    %50 = vector.shape_cast %49 : vector<1x128x128xf32> to vector<128x128xf32>
    %cst_41 = arith.constant dense<0.000000e+00> : vector<32x128xf32>
    %51 = tpu.matmul %46, %50, %cst_41 {dimension_numbers = #tpu.dot_dimension_numbers<[1], [0], [0], [1], [0, 0, 1, 1], [], []>} : vector<32x128xf32>, vector<128x128xf32>, vector<32x128xf32> -> vector<32x128xf32>
    %c1_42 = arith.constant 1 : index
    %c0_43 = arith.constant 0 : index
    %c0_44 = arith.constant 0 : index
    %52 = vector.load %arg2[%c1_42, %c0_43, %c0_44] : memref<3x128x128xf32, #tpu.memory_space<vmem>>, vector<1x128x128xf32>
    %53 = vector.shape_cast %52 : vector<1x128x128xf32> to vector<128x128xf32>
    %cst_45 = arith.constant dense<0.000000e+00> : vector<32x128xf32>
    %54 = tpu.matmul %44, %53, %cst_45 {dimension_numbers = #tpu.dot_dimension_numbers<[1], [0], [0], [1], [0, 0, 1, 1], [], []>} : vector<32x128xf32>, vector<128x128xf32>, vector<32x128xf32> -> vector<32x128xf32>
    %55 = arith.addf %51, %54 : vector<32x128xf32>
    %c2_46 = arith.constant 2 : index
    %c0_47 = arith.constant 0 : index
    %c0_48 = arith.constant 0 : index
    %56 = vector.load %arg2[%c2_46, %c0_47, %c0_48] : memref<3x128x128xf32, #tpu.memory_space<vmem>>, vector<1x128x128xf32>
    %57 = vector.shape_cast %56 : vector<1x128x128xf32> to vector<128x128xf32>
    %cst_49 = arith.constant dense<0.000000e+00> : vector<32x128xf32>
    %58 = tpu.matmul %48, %57, %cst_49 {dimension_numbers = #tpu.dot_dimension_numbers<[1], [0], [0], [1], [0, 0, 1, 1], [], []>} : vector<32x128xf32>, vector<128x128xf32>, vector<32x128xf32> -> vector<32x128xf32>
    %59 = arith.addf %55, %58 : vector<32x128xf32>
    %cst_50 = arith.constant dense<0.000000e+00> : vector<128xf32>
    %60 = vector.multi_reduction <add>, %59, %cst_50 [0] : vector<32x128xf32> to vector<128xf32>
    %61 = vector.shape_cast %60 : vector<128xf32> to vector<1x128xf32>
    %62 = arith.mulf %59, %59 : vector<32x128xf32>
    %cst_51 = arith.constant dense<0.000000e+00> : vector<128xf32>
    %63 = vector.multi_reduction <add>, %62, %cst_51 [0] : vector<32x128xf32> to vector<128xf32>
    %64 = vector.shape_cast %63 : vector<128xf32> to vector<1x128xf32>
    %c0_52 = arith.constant 0 : index
    %c0_53 = arith.constant 0 : index
    %65 = vector.load %arg5[%c0_52, %c0_53] : memref<128x128xf32, #tpu.memory_space<vmem>>, vector<128x128xf32>
    %cst_54 = arith.constant dense<0.000000e+00> : vector<1x128xf32>
    %66 = tpu.matmul %61, %65, %cst_54 {dimension_numbers = #tpu.dot_dimension_numbers<[1], [0], [0], [1], [0, 0, 1, 1], [], []>} : vector<1x128xf32>, vector<128x128xf32>, vector<1x128xf32> -> vector<1x128xf32>
    %cst_55 = arith.constant 0.001953125 : f32
    %67 = vector.broadcast %cst_55 : f32 to vector<1x128xf32>
    %68 = arith.mulf %66, %67 : vector<1x128xf32>
    %c0_56 = arith.constant 0 : index
    %c0_57 = arith.constant 0 : index
    %69 = vector.load %arg5[%c0_56, %c0_57] : memref<128x128xf32, #tpu.memory_space<vmem>>, vector<128x128xf32>
    %cst_58 = arith.constant dense<0.000000e+00> : vector<1x128xf32>
    %70 = tpu.matmul %64, %69, %cst_58 {dimension_numbers = #tpu.dot_dimension_numbers<[1], [0], [0], [1], [0, 0, 1, 1], [], []>} : vector<1x128xf32>, vector<128x128xf32>, vector<1x128xf32> -> vector<1x128xf32>
    %cst_59 = arith.constant 0.001953125 : f32
    %71 = vector.broadcast %cst_59 : f32 to vector<1x128xf32>
    %72 = arith.mulf %70, %71 : vector<1x128xf32>
    %73 = arith.mulf %68, %68 : vector<1x128xf32>
    %74 = arith.subf %72, %73 : vector<1x128xf32>
    %cst_60 = arith.constant 9.99999974E-6 : f32
    %75 = vector.broadcast %cst_60 : f32 to vector<1x128xf32>
    %76 = arith.addf %74, %75 : vector<1x128xf32>
    %77 = math.rsqrt %76 : vector<1x128xf32>
    %c0_61 = arith.constant 0 : index
    %c0_62 = arith.constant 0 : index
    %78 = vector.load %arg8[%c0_61, %c0_62] : memref<1x128xf32, #tpu.memory_space<vmem>>, vector<1x128xf32>
    %79 = arith.mulf %77, %78 : vector<1x128xf32>
    %80 = vector.broadcast %68 : vector<1x128xf32> to vector<32x128xf32>
    %81 = arith.subf %59, %80 : vector<32x128xf32>
    %82 = vector.broadcast %79 : vector<1x128xf32> to vector<32x128xf32>
    %83 = arith.mulf %81, %82 : vector<32x128xf32>
    %c0_63 = arith.constant 0 : index
    %c0_64 = arith.constant 0 : index
    %84 = vector.load %arg9[%c0_63, %c0_64] : memref<1x128xf32, #tpu.memory_space<vmem>>, vector<1x128xf32>
    %85 = vector.broadcast %84 : vector<1x128xf32> to vector<32x128xf32>
    %86 = arith.addf %83, %85 : vector<32x128xf32>
    %87 = arith.addf %86, %0 : vector<32x128xf32>
    %cst_65 = arith.constant 0.000000e+00 : f32
    %88 = vector.broadcast %cst_65 : f32 to vector<32x128xf32>
    %89 = arith.maximumf %87, %88 : vector<32x128xf32>
    %c0_66 = arith.constant 0 : index
    %c0_67 = arith.constant 0 : index
    %90 = vector.load %arg10[%c0_66, %c0_67] : memref<32x128xf32, #tpu.memory_space<vmem>>, vector<32x128xf32>
    tpu.vector_store %arg10[%c0_66, %c0_67], %89 {strides = array<i32>} : memref<32x128xf32, #tpu.memory_space<vmem>>, vector<32x128xf32>,
    return
  }
}

</mosaic_0001>

<llo_original>
// kernel: tpu_custom_call.1
$region0: #{tpu_custom_call.1}
  #allocation0 [shape = 'u32[]', space=smem, size = 0x4, offset = 0x4, fixed_abs, tag = 'smem constant byte address 0x4 - core index']
  #allocation1 [shape = 'u32[144,128]{1,0:T(1,128)}', space=vmem, size = 0x12000, scoped, tag = 'internal scratch']
  %s0 = inlined_call_operand.hbm [shape: f32[32,128], index: 0, kind: input, shape index: {}]
  %s1 = inlined_call_operand.hbm [shape: f32[3,128,128], index: 1, kind: input, shape index: {}]
  %s2 = inlined_call_operand.hbm [shape: f32[3,128,128], index: 2, kind: input, shape index: {}]
  %s3 = inlined_call_operand.hbm [shape: f32[32,32], index: 3, kind: input, shape index: {}]
  %s4 = inlined_call_operand.hbm [shape: f32[32,32], index: 4, kind: input, shape index: {}]
  %s5 = inlined_call_operand.hbm [shape: f32[128,128], index: 5, kind: input, shape index: {}]
  %s6 = inlined_call_operand.vmem [shape: f32[1,128], index: 6, kind: input, shape index: {}]
  %s7 = inlined_call_operand.vmem [shape: f32[1,128], index: 7, kind: input, shape index: {}]
  %s8 = inlined_call_operand.vmem [shape: f32[1,128], index: 8, kind: input, shape index: {}]
  %s9 = inlined_call_operand.vmem [shape: f32[1,128], index: 9, kind: input, shape index: {}]
  %s10 = inlined_call_operand.hbm [shape: f32[32,128], index: 10, kind: output, shape index: {}]
  %s11 = sld [smem:[#allocation0]]
  $region74: #{tpu_custom_call.1} parent=0
    _
  %s13 = ssub.s32 1, %s11
  %s14 = scalar_select 0, %s13, %s11
  $region1: #{tpu_custom_call.1} parent=0
    #allocation2 [shape = 'u8[16384]{0}', space=vmem, size = 0x4000, scoped, tag = 'input window, operand 0, single buffered']
    #allocation3 [shape = 's32[1]{0}', space=sflag, size = 0x4, scoped, tag = 'scoped memory for tpu_custom_call.1']
    #allocation4 [shape = 's32[1]{0}', space=sflag, size = 0x4, scoped, tag = 'scoped memory for tpu_custom_call.1']
    #allocation5 [shape = 'u8[196608]{0}', space=vmem, size = 0x30000, scoped, tag = 'input window, operand 1, single buffered']
    #allocation6 [shape = 's32[1]{0}', space=sflag, size = 0x4, scoped, tag = 'scoped memory for tpu_custom_call.1']
    #allocation7 [shape = 'u8[196608]{0}', space=vmem, size = 0x30000, scoped, tag = 'input window, operand 2, single buffered']
    #allocation8 [shape = 'u8[16384]{0}', space=vmem, size = 0x4000, scoped, tag = 'input window, operand 3, single buffered']
    #allocation9 [shape = 's32[1]{0}', space=sflag, size = 0x4, scoped, tag = 'scoped memory for tpu_custom_call.1']
    #allocation10 [shape = 'u8[16384]{0}', space=vmem, size = 0x4000, scoped, tag = 'input window, operand 4, single buffered']
    #allocation11 [shape = 'u8[65536]{0}', space=vmem, size = 0x10000, scoped, tag = 'input window, operand 5, single buffered']
    #allocation12 [shape = 's32[1]{0}', space=sflag, size = 0x4, scoped, tag = 'scoped memory for tpu_custom_call.1']
    #allocation13 [shape = 'u8[16384]{0}', space=vmem, size = 0x4000, scoped, tag = 'output window, operand 0, single buffered']
    %15 = vsyncpa [#allocation3], 0
    %16 = vsyncpa [#allocation6], 0
    %17 = vsyncpa [#allocation9], 0
    %18 = vsyncpa [#allocation12], 0
    %19 = vsyncpa [#allocation4], 0
    // Predicated region
    $region2: #{tpu_custom_call.1} parent=1 // pred_check
      _
    $region3: #{tpu_custom_call.1} parent=1 // pred_check_branch
      %21 = sbr.rel (0) target = $region5
    $region4: #{tpu_custom_call.1} parent=1 // pred_region
      %s23 = ssub.s32 512, 512
      %24 = vsyncadd [#allocation3], %s23
      %s25 = sshll.u32 [#allocation2], 4
      %s26 = int_to_ptr.vmem [resolvable:$true] %s25
      %31 = dma.hbm_to_vmem [thread:$0]  %s0, 512, %s26, [#allocation3], 128, 128, 8
    $region5: #{tpu_custom_call.1} parent=1 // pred_fallthru
      _
    // Predicated region
    $region6: #{tpu_custom_call.1} parent=1 // pred_check
      _
    $region7: #{tpu_custom_call.1} parent=1 // pred_check_branch
      %33 = sbr.rel (0) target = $region9
    $region8: #{tpu_custom_call.1} parent=1 // pred_region
      %s35 = ssub.s32 6144, 6144
      %36 = vsyncadd [#allocation6], %s35
      %s37 = sshll.u32 [#allocation5], 4
      %s38 = int_to_ptr.vmem [resolvable:$true] %s37
      %43 = dma.hbm_to_vmem [thread:$0]  %s1, 6144, %s38, [#allocation6], 128, 128, 8
    $region9: #{tpu_custom_call.1} parent=1 // pred_fallthru
      _
    // Predicated region
    $region10: #{tpu_custom_call.1} parent=1 // pred_check
      _
    $region11: #{tpu_custom_call.1} parent=1 // pred_check_branch
      %45 = sbr.rel (0) target = $region13
    $region12: #{tpu_custom_call.1} parent=1 // pred_region
      %s47 = ssub.s32 6144, 6144
      %48 = vsyncadd [#allocation6], %s47
      %s49 = sshll.u32 [#allocation7], 4
      %s50 = int_to_ptr.vmem [resolvable:$true] %s49
      %55 = dma.hbm_to_vmem [thread:$0]  %s2, 6144, %s50, [#allocation6], 128, 128, 8
    $region13: #{tpu_custom_call.1} parent=1 // pred_fallthru
      _
    // Predicated region
    $region14: #{tpu_custom_call.1} parent=1 // pred_check
      _
    $region15: #{tpu_custom_call.1} parent=1 // pred_check_branch
      %57 = sbr.rel (0) target = $region17
    $region16: #{tpu_custom_call.1} parent=1 // pred_region
      %s59 = ssub.s32 512, 512
      %60 = vsyncadd [#allocation9], %s59
      %s61 = sshll.u32 [#allocation8], 4
      %s62 = int_to_ptr.vmem [resolvable:$true] %s61
      %67 = dma.hbm_to_vmem [thread:$0]  %s3, 512, %s62, [#allocation9], 128, 128, 8
    $region17: #{tpu_custom_call.1} parent=1 // pred_fallthru
      _
    // Predicated region
    $region18: #{tpu_custom_call.1} parent=1 // pred_check
      _
    $region19: #{tpu_custom_call.1} parent=1 // pred_check_branch
      %69 = sbr.rel (0) target = $region21
    $region20: #{tpu_custom_call.1} parent=1 // pred_region
      %s71 = ssub.s32 512, 512
      %72 = vsyncadd [#allocation9], %s71
      %s73 = sshll.u32 [#allocation10], 4
      %s74 = int_to_ptr.vmem [resolvable:$true] %s73
      %79 = dma.hbm_to_vmem [thread:$0]  %s4, 512, %s74, [#allocation9], 128, 128, 8
    $region21: #{tpu_custom_call.1} parent=1 // pred_fallthru
      _
    // Predicated region
    $region22: #{tpu_custom_call.1} parent=1 // pred_check
      _
    $region23: #{tpu_custom_call.1} parent=1 // pred_check_branch
      %81 = sbr.rel (0) target = $region25
    $region24: #{tpu_custom_call.1} parent=1 // pred_region
      %s83 = ssub.s32 2048, 2048
      %84 = vsyncadd [#allocation12], %s83
      %s85 = sshll.u32 [#allocation11], 4
      %s86 = int_to_ptr.vmem [resolvable:$true] %s85
      %91 = dma.hbm_to_vmem [thread:$0]  %s5, 2048, %s86, [#allocation12], 128, 128, 8
    $region25: #{tpu_custom_call.1} parent=1 // pred_fallthru
      _
    // Predicated region
    $region26: #{tpu_custom_call.1} parent=1 // pred_check
      _
    $region27: #{tpu_custom_call.1} parent=1 // pred_check_branch
      %93 = sbr.rel (0) target = $region29
    $region28: #{tpu_custom_call.1} parent=1 // pred_region
      _
    $region29: #{tpu_custom_call.1} parent=1 // pred_fallthru
      _
    // Predicated region
    $region30: #{tpu_custom_call.1} parent=1 // pred_check
      _
    $region31: #{tpu_custom_call.1} parent=1 // pred_check_branch
      %95 = sbr.rel (0) target = $region33
    $region32: #{tpu_custom_call.1} parent=1 // pred_region
      _
    $region33: #{tpu_custom_call.1} parent=1 // pred_fallthru
      _
    // Predicated region
    $region34: #{tpu_custom_call.1} parent=1 // pred_check
      _
    $region35: #{tpu_custom_call.1} parent=1 // pred_check_branch
      %97 = sbr.rel (0) target = $region37
    $region36: #{tpu_custom_call.1} parent=1 // pred_region
      _
    $region37: #{tpu_custom_call.1} parent=1 // pred_fallthru
      _
    // Predicated region
    $region38: #{tpu_custom_call.1} parent=1 // pred_check
      _
    $region39: #{tpu_custom_call.1} parent=1 // pred_check_branch
      %99 = sbr.rel (0) target = $region41
    $region40: #{tpu_custom_call.1} parent=1 // pred_region
      _
    $region41: #{tpu_custom_call.1} parent=1 // pred_fallthru
      _
    // Predicated region
    $region42: #{tpu_custom_call.1} parent=1 // pred_check
      _
    $region43: #{tpu_custom_call.1} parent=1 // pred_check_branch
      %101 = sbr.rel (0) target = $region45
    $region44: #{tpu_custom_call.1} parent=1 // pred_region
      %102 = dma.done [#allocation3], 512
    $region45: #{tpu_custom_call.1} parent=1 // pred_fallthru
      _
    // Predicated region
    $region46: #{tpu_custom_call.1} parent=1 // pred_check
      _
    $region47: #{tpu_custom_call.1} parent=1 // pred_check_branch
      %104 = sbr.rel (0) target = $region49
    $region48: #{tpu_custom_call.1} parent=1 // pred_region
      %105 = dma.done [#allocation6], 6144
    $region49: #{tpu_custom_call.1} parent=1 // pred_fallthru
      _
    // Predicated region
    $region50: #{tpu_custom_call.1} parent=1 // pred_check
      _
    $region51: #{tpu_custom_call.1} parent=1 // pred_check_branch
      %107 = sbr.rel (0) target = $region53
    $region52: #{tpu_custom_call.1} parent=1 // pred_region
      %108 = dma.done [#allocation6], 6144
    $region53: #{tpu_custom_call.1} parent=1 // pred_fallthru
      _
    // Predicated region
    $region54: #{tpu_custom_call.1} parent=1 // pred_check
      _
    $region55: #{tpu_custom_call.1} parent=1 // pred_check_branch
      %110 = sbr.rel (0) target = $region57
    $region56: #{tpu_custom_call.1} parent=1 // pred_region
      %111 = dma.done [#allocation9], 512
    $region57: #{tpu_custom_call.1} parent=1 // pred_fallthru
      _
    // Predicated region
    $region58: #{tpu_custom_call.1} parent=1 // pred_check
      _
    $region59: #{tpu_custom_call.1} parent=1 // pred_check_branch
      %113 = sbr.rel (0) target = $region61
    $region60: #{tpu_custom_call.1} parent=1 // pred_region
      %114 = dma.done [#allocation9], 512
    $region61: #{tpu_custom_call.1} parent=1 // pred_fallthru
      _
    // Predicated region
    $region62: #{tpu_custom_call.1} parent=1 // pred_check
      _
    $region63: #{tpu_custom_call.1} parent=1 // pred_check_branch
      %116 = sbr.rel (0) target = $region65
    $region64: #{tpu_custom_call.1} parent=1 // pred_region
      %117 = dma.done [#allocation12], 2048
    $region65: #{tpu_custom_call.1} parent=1 // pred_fallthru
      _
    %v118 = vld [vmem:[#allocation2] sm:$0xff]
    %v119 = vld [vmem:[#allocation2 + $0x8] sm:$0xff]
    %v120 = vld [vmem:[#allocation2 + $0x10] sm:$0xff]
    %v121 = vld [vmem:[#allocation2 + $0x18] sm:$0xff]
    %v122 = vld [vmem:[#allocation8] sm:$0xff]
    %v123 = vld [vmem:[#allocation8 + $0x8] sm:$0xff]
    %v124 = vld [vmem:[#allocation8 + $0x10] sm:$0xff]
    %v125 = vld [vmem:[#allocation8 + $0x18] sm:$0xff]
    %vm126 = vcmask 261120
    %v128 = vsel %vm126, %v122, 0
    %v131 = vsel %vm126, %v123, 0
    %v134 = vsel %vm126, %v124, 0
    %v137 = vsel %vm126, %v125, 0
    %139 = vmatprep.subr.mxu0 0.0
    %140 = vmatpush1.msra.mxu0 0.0
    %141 = vmatprep.subr.mxu0 0.0
    %142 = vmatpush1.msra.mxu0 0.0
    %143 = vmatprep.subr.mxu0 0.0
    %144 = vmatpush1.msra.mxu0 0.0
    %145 = vmatprep.subr.mxu0 0.0
    %146 = vmatpush1.msra.mxu0 0.0
    %147 = vmatprep.subr.mxu0 0.0
    %148 = vmatpush1.msra.mxu0 0.0
    %149 = vmatprep.subr.mxu0 0.0
    %150 = vmatpush1.msra.mxu0 0.0
    %151 = vmatprep.subr.mxu0 0.0
    %152 = vmatpush1.msra.mxu0 0.0
    %153 = vmatprep.subr.mxu0 0.0
    %154 = vmatpush1.msra.mxu0 0.0
    %155 = vmatprep.subr.mxu0 0.0
    %156 = vmatpush1.msra.mxu0 0.0
    %157 = vmatprep.subr.mxu0 0.0
    %158 = vmatpush1.msra.mxu0 0.0
    %159 = vmatprep.subr.mxu0 0.0
    %160 = vmatpush1.msra.mxu0 0.0
    %161 = vmatprep.subr.mxu0 0.0
    %162 = vmatpush1.msra.mxu0 0.0
    %163 = vmatprep.subr.mxu0 0.0
    %164 = vmatpush1.msra.mxu0 %v121
    %165 = vmatprep.subr.mxu0 0.0
    %166 = vmatpush1.msra.mxu0 %v120
    %167 = vmatprep.subr.mxu0 0.0
    %168 = vmatpush1.msra.mxu0 %v119
    %169 = vmatprep.subr.mxu0 0.0
    %170 = vmatpush1.msra.mxu0 %v118
    %171 = vmatprep.subr.mxu0 0.0
    %172 = vmatpush2.msra.mxu0 0.0
    %173 = vmatprep.subr.mxu0 0.0
    %174 = vmatpush2.msra.mxu0 0.0
    %175 = vmatprep.subr.mxu0 0.0
    %176 = vmatpush2.msra.mxu0 0.0
    %177 = vmatprep.subr.mxu0 0.0
    %178 = vmatpush2.msra.mxu0 0.0
    %179 = vmatprep.subr.mxu0 0.0
    %180 = vmatpush2.msra.mxu0 0.0
    %181 = vmatprep.subr.mxu0 0.0
    %182 = vmatpush2.msra.mxu0 0.0
    %183 = vmatprep.subr.mxu0 0.0
    %184 = vmatpush2.msra.mxu0 0.0
    %185 = vmatprep.subr.mxu0 0.0
    %186 = vmatpush2.msra.mxu0 0.0
    %187 = vmatprep.subr.mxu0 0.0
    %188 = vmatpush2.msra.mxu0 0.0
    %189 = vmatprep.subr.mxu0 0.0
    %190 = vmatpush2.msra.mxu0 0.0
    %191 = vmatprep.subr.mxu0 0.0
    %192 = vmatpush2.msra.mxu0 0.0
    %193 = vmatprep.subr.mxu0 0.0
    %194 = vmatpush2.msra.mxu0 0.0
    %195 = vmatprep.subr.mxu0 0.0
    %196 = vmatpush2.msra.mxu0 0.0
    %197 = vmatprep.subr.mxu0 0.0
    %198 = vmatpush2.msra.mxu0 0.0
    %199 = vmatprep.subr.mxu0 0.0
    %200 = vmatpush2.msra.mxu0 0.0
    %201 = vmatprep.subr.mxu0 0.0
    %202 = vmatpush2.msra.mxu0 0.0
    %203 = vmatprep.mubr.f32.mxu0 0.0
    %204 = vmatmul.mubr.f32.gmra.mxu0 %v128
    %v205 = vpop.f32.mrf.mxu0
    %v206 = vadd.f32 0.0, %v205
    %v207 = vpop.f32.mrf.mxu0
    %208 = vmatprep.mubr.f32.mxu0 0.0
    %209 = vmatmul.mubr.f32.gmra.mxu0 %v131
    %v210 = vpop.f32.mrf.mxu0
    %v211 = vadd.f32 0.0, %v210
    %v212 = vpop.f32.mrf.mxu0
    %213 = vmatprep.mubr.f32.mxu0 0.0
    %214 = vmatmul.mubr.f32.gmra.mxu0 %v134
    %v215 = vpop.f32.mrf.mxu0
    %v216 = vadd.f32 0.0, %v215
    %v217 = vpop.f32.mrf.mxu0
    %218 = vmatprep.mubr.f32.mxu0 0.0
    %219 = vmatmul.mubr.f32.gmra.mxu0 %v137
    %v220 = vpop.f32.mrf.mxu0
    %v221 = vadd.f32 0.0, %v220
    %v222 = vpop.f32.mrf.mxu0
    %223 = vdwg.mxu0
    %v224 = vld [vmem:[#allocation10] sm:$0xff]
    %v225 = vld [vmem:[#allocation10 + $0x8] sm:$0xff]
    %v226 = vld [vmem:[#allocation10 + $0x10] sm:$0xff]
    %v227 = vld [vmem:[#allocation10 + $0x18] sm:$0xff]
    %v229 = vsel %vm126, %v224, 0
    %v232 = vsel %vm126, %v225, 0
    %v235 = vsel %vm126, %v226, 0
    %v238 = vsel %vm126, %v227, 0
    %240 = vmatprep.subr.mxu0 0.0
    %241 = vmatpush1.msra.mxu0 0.0
    %242 = vmatprep.subr.mxu0 0.0
    %243 = vmatpush1.msra.mxu0 0.0
    %244 = vmatprep.subr.mxu0 0.0
    %245 = vmatpush1.msra.mxu0 0.0
    %246 = vmatprep.subr.mxu0 0.0
    %247 = vmatpush1.msra.mxu0 0.0
    %248 = vmatprep.subr.mxu0 0.0
    %249 = vmatpush1.msra.mxu0 0.0
    %250 = vmatprep.subr.mxu0 0.0
    %251 = vmatpush1.msra.mxu0 0.0
    %252 = vmatprep.subr.mxu0 0.0
    %253 = vmatpush1.msra.mxu0 0.0
    %254 = vmatprep.subr.mxu0 0.0
    %255 = vmatpush1.msra.mxu0 0.0
    %256 = vmatprep.subr.mxu0 0.0
    %257 = vmatpush1.msra.mxu0 0.0
    %258 = vmatprep.subr.mxu0 0.0
    %259 = vmatpush1.msra.mxu0 0.0
    %260 = vmatprep.subr.mxu0 0.0
    %261 = vmatpush1.msra.mxu0 0.0
    %262 = vmatprep.subr.mxu0 0.0
    %263 = vmatpush1.msra.mxu0 0.0
    %264 = vmatprep.subr.mxu0 0.0
    %265 = vmatpush1.msra.mxu0 %v121
    %266 = vmatprep.subr.mxu0 0.0
    %267 = vmatpush1.msra.mxu0 %v120
    %268 = vmatprep.subr.mxu0 0.0
    %269 = vmatpush1.msra.mxu0 %v119
    %270 = vmatprep.subr.mxu0 0.0
    %271 = vmatpush1.msra.mxu0 %v118
    %272 = vmatprep.subr.mxu0 0.0
    %273 = vmatpush2.msra.mxu0 0.0
    %274 = vmatprep.subr.mxu0 0.0
    %275 = vmatpush2.msra.mxu0 0.0
    %276 = vmatprep.subr.mxu0 0.0
    %277 = vmatpush2.msra.mxu0 0.0
    %278 = vmatprep.subr.mxu0 0.0
    %279 = vmatpush2.msra.mxu0 0.0
    %280 = vmatprep.subr.mxu0 0.0
    %281 = vmatpush2.msra.mxu0 0.0
    %282 = vmatprep.subr.mxu0 0.0
    %283 = vmatpush2.msra.mxu0 0.0
    %284 = vmatprep.subr.mxu0 0.0
    %285 = vmatpush2.msra.mxu0 0.0
    %286 = vmatprep.subr.mxu0 0.0
    %287 = vmatpush2.msra.mxu0 0.0
    %288 = vmatprep.subr.mxu0 0.0
    %289 = vmatpush2.msra.mxu0 0.0
    %290 = vmatprep.subr.mxu0 0.0
    %291 = vmatpush2.msra.mxu0 0.0
    %292 = vmatprep.subr.mxu0 0.0
    %293 = vmatpush2.msra.mxu0 0.0
    %294 = vmatprep.subr.mxu0 0.0
    %295 = vmatpush2.msra.mxu0 0.0
    %296 = vmatprep.subr.mxu0 0.0
    %297 = vmatpush2.msra.mxu0 0.0
    %298 = vmatprep.subr.mxu0 0.0
    %299 = vmatpush2.msra.mxu0 0.0
    %300 = vmatprep.subr.mxu0 0.0
    %301 = vmatpush2.msra.mxu0 0.0
    %302 = vmatprep.subr.mxu0 0.0
    %303 = vmatpush2.msra.mxu0 0.0
    %304 = vmatprep.mubr.f32.mxu0 0.0
    %305 = vmatmul.mubr.f32.gmra.mxu0 %v229
    %v306 = vpop.f32.mrf.mxu0
    %v307 = vadd.f32 0.0, %v306
    %v308 = vpop.f32.mrf.mxu0
    %309 = vmatprep.mubr.f32.mxu0 0.0
    %310 = vmatmul.mubr.f32.gmra.mxu0 %v232
    %v311 = vpop.f32.mrf.mxu0
    %v312 = vadd.f32 0.0, %v311
    %v313 = vpop.f32.mrf.mxu0
    %314 = vmatprep.mubr.f32.mxu0 0.0
    %315 = vmatmul.mubr.f32.gmra.mxu0 %v235
    %v316 = vpop.f32.mrf.mxu0
    %v317 = vadd.f32 0.0, %v316
    %v318 = vpop.f32.mrf.mxu0
    %319 = vmatprep.mubr.f32.mxu0 0.0
    %320 = vmatmul.mubr.f32.gmra.mxu0 %v238
    %v321 = vpop.f32.mrf.mxu0
    %v322 = vadd.f32 0.0, %v321
    %v323 = vpop.f32.mrf.mxu0
    %324 = vdwg.mxu0
    %v325 = vld [vmem:[#allocation5] sm:$0xff]
    %v326 = vld [vmem:[#allocation5 + $0x8] sm:$0xff]
    %v327 = vld [vmem:[#allocation5 + $0x10] sm:$0xff]
    %v328 = vld [vmem:[#allocation5 + $0x18] sm:$0xff]
    %v329 = vld [vmem:[#allocation5 + $0x20] sm:$0xff]
    %v330 = vld [vmem:[#allocation5 + $0x28] sm:$0xff]
    %v331 = vld [vmem:[#allocation5 + $0x30] sm:$0xff]
    %v332 = vld [vmem:[#allocation5 + $0x38] sm:$0xff]
    %v333 = vld [vmem:[#allocation5 + $0x40] sm:$0xff]
    %v334 = vld [vmem:[#allocation5 + $0x48] sm:$0xff]
    %v335 = vld [vmem:[#allocation5 + $0x50] sm:$0xff]
    %v336 = vld [vmem:[#allocation5 + $0x58] sm:$0xff]
    %v337 = vld [vmem:[#allocation5 + $0x60] sm:$0xff]
    %v338 = vld [vmem:[#allocation5 + $0x68] sm:$0xff]
    %v339 = vld [vmem:[#allocation5 + $0x70] sm:$0xff]
    %v340 = vld [vmem:[#allocation5 + $0x78] sm:$0xff]
    %s341 = scalar_lea.vmem [#allocation5], 128
    %v342 = vld [vmem:[%s341] sm:$0xff]
    %v343 = vld [vmem:[%s341 + $0x8] sm:$0xff]
    %v344 = vld [vmem:[%s341 + $0x10] sm:$0xff]
    %v345 = vld [vmem:[%s341 + $0x18] sm:$0xff]
    %v346 = vld [vmem:[%s341 + $0x20] sm:$0xff]
    %v347 = vld [vmem:[%s341 + $0x28] sm:$0xff]
    %v348 = vld [vmem:[%s341 + $0x30] sm:$0xff]
    %v349 = vld [vmem:[%s341 + $0x38] sm:$0xff]
    %v350 = vld [vmem:[%s341 + $0x40] sm:$0xff]
    %v351 = vld [vmem:[%s341 + $0x48] sm:$0xff]
    %v352 = vld [vmem:[%s341 + $0x50] sm:$0xff]
    %v353 = vld [vmem:[%s341 + $0x58] sm:$0xff]
    %v354 = vld [vmem:[%s341 + $0x60] sm:$0xff]
    %v355 = vld [vmem:[%s341 + $0x68] sm:$0xff]
    %v356 = vld [vmem:[%s341 + $0x70] sm:$0xff]
    %v357 = vld [vmem:[%s341 + $0x78] sm:$0xff]
    %358 = vmatprep.subr.mxu0 0.0
    %359 = vmatpush1.msra.mxu0 %v357
    %360 = vmatprep.subr.mxu0 0.0
    %361 = vmatpush1.msra.mxu0 %v356
    %362 = vmatprep.subr.mxu0 0.0
    %363 = vmatpush1.msra.mxu0 %v355
    %364 = vmatprep.subr.mxu0 0.0
    %365 = vmatpush1.msra.mxu0 %v354
    %366 = vmatprep.subr.mxu0 0.0
    %367 = vmatpush1.msra.mxu0 %v353
    %368 = vmatprep.subr.mxu0 0.0
    %369 = vmatpush1.msra.mxu0 %v352
    %370 = vmatprep.subr.mxu0 0.0
    %371 = vmatpush1.msra.mxu0 %v351
    %372 = vmatprep.subr.mxu0 0.0
    %373 = vmatpush1.msra.mxu0 %v350
    %374 = vmatprep.subr.mxu0 0.0
    %375 = vmatpush1.msra.mxu0 %v349
    %376 = vmatprep.subr.mxu0 0.0
    %377 = vmatpush1.msra.mxu0 %v348
    %378 = vmatprep.subr.mxu0 0.0
    %379 = vmatpush1.msra.mxu0 %v347
    %380 = vmatprep.subr.mxu0 0.0
    %381 = vmatpush1.msra.mxu0 %v346
    %382 = vmatprep.subr.mxu0 0.0
    %383 = vmatpush1.msra.mxu0 %v345
    %384 = vmatprep.subr.mxu0 0.0
    %385 = vmatpush1.msra.mxu0 %v344
    %386 = vmatprep.subr.mxu0 0.0
    %387 = vmatpush1.msra.mxu0 %v343
    %388 = vmatprep.subr.mxu0 0.0
    %389 = vmatpush1.msra.mxu0 %v342
    %390 = vmatprep.subr.mxu0 0.0
    %391 = vmatpush2.msra.mxu0 0.0
    %392 = vmatprep.subr.mxu0 0.0
    %393 = vmatpush2.msra.mxu0 0.0
    %394 = vmatprep.subr.mxu0 0.0
    %395 = vmatpush2.msra.mxu0 0.0
    %396 = vmatprep.subr.mxu0 0.0
    %397 = vmatpush2.msra.mxu0 0.0
    %398 = vmatprep.subr.mxu0 0.0
    %399 = vmatpush2.msra.mxu0 0.0
    %400 = vmatprep.subr.mxu0 0.0
    %401 = vmatpush2.msra.mxu0 0.0
    %402 = vmatprep.subr.mxu0 0.0
    %403 = vmatpush2.msra.mxu0 0.0
    %404 = vmatprep.subr.mxu0 0.0
    %405 = vmatpush2.msra.mxu0 0.0
    %406 = vmatprep.subr.mxu0 0.0
    %407 = vmatpush2.msra.mxu0 0.0
    %408 = vmatprep.subr.mxu0 0.0
    %409 = vmatpush2.msra.mxu0 0.0
    %410 = vmatprep.subr.mxu0 0.0
    %411 = vmatpush2.msra.mxu0 0.0
    %412 = vmatprep.subr.mxu0 0.0
    %413 = vmatpush2.msra.mxu0 0.0
    %414 = vmatprep.subr.mxu0 0.0
    %415 = vmatpush2.msra.mxu0 0.0
    %416 = vmatprep.subr.mxu0 0.0
    %417 = vmatpush2.msra.mxu0 0.0
    %418 = vmatprep.subr.mxu0 0.0
    %419 = vmatpush2.msra.mxu0 0.0
    %420 = vmatprep.subr.mxu0 0.0
    %421 = vmatpush2.msra.mxu0 0.0
    %422 = vmatprep.mubr.f32.mxu0 0.0
    %423 = vmatmul.mubr.f32.gmra.mxu0 %v118
    %v424 = vpop.f32.mrf.mxu0
    %v425 = vadd.f32 0.0, %v424
    %v426 = vpop.f32.mrf.mxu0
    %427 = vmatprep.mubr.f32.mxu0 0.0
    %428 = vmatmul.mubr.f32.gmra.mxu0 %v119
    %v429 = vpop.f32.mrf.mxu0
    %v430 = vadd.f32 0.0, %v429
    %v431 = vpop.f32.mrf.mxu0
    %432 = vmatprep.mubr.f32.mxu0 0.0
    %433 = vmatmul.mubr.f32.gmra.mxu0 %v120
    %v434 = vpop.f32.mrf.mxu0
    %v435 = vadd.f32 0.0, %v434
    %v436 = vpop.f32.mrf.mxu0
    %437 = vmatprep.mubr.f32.mxu0 0.0
    %438 = vmatmul.mubr.f32.gmra.mxu0 %v121
    %v439 = vpop.f32.mrf.mxu0
    %v440 = vadd.f32 0.0, %v439
    %v441 = vpop.f32.mrf.mxu0
    %442 = vdwg.mxu0
    %443 = vmatprep.subr.mxu0 0.0
    %444 = vmatpush1.msra.mxu0 %v340
    %445 = vmatprep.subr.mxu0 0.0
    %446 = vmatpush1.msra.mxu0 %v339
    %447 = vmatprep.subr.mxu0 0.0
    %448 = vmatpush1.msra.mxu0 %v338
    %449 = vmatprep.subr.mxu0 0.0
    %450 = vmatpush1.msra.mxu0 %v337
    %451 = vmatprep.subr.mxu0 0.0
    %452 = vmatpush1.msra.mxu0 %v336
    %453 = vmatprep.subr.mxu0 0.0
    %454 = vmatpush1.msra.mxu0 %v335
    %455 = vmatprep.subr.mxu0 0.0
    %456 = vmatpush1.msra.mxu0 %v334
    %457 = vmatprep.subr.mxu0 0.0
    %458 = vmatpush1.msra.mxu0 %v333
    %459 = vmatprep.subr.mxu0 0.0
    %460 = vmatpush1.msra.mxu0 %v332
    %461 = vmatprep.subr.mxu0 0.0
    %462 = vmatpush1.msra.mxu0 %v331
    %463 = vmatprep.subr.mxu0 0.0
    %464 = vmatpush1.msra.mxu0 %v330
    %465 = vmatprep.subr.mxu0 0.0
    %466 = vmatpush1.msra.mxu0 %v329
    %467 = vmatprep.subr.mxu0 0.0
    %468 = vmatpush1.msra.mxu0 %v328
    %469 = vmatprep.subr.mxu0 0.0
    %470 = vmatpush1.msra.mxu0 %v327
    %471 = vmatprep.subr.mxu0 0.0
    %472 = vmatpush1.msra.mxu0 %v326
    %473 = vmatprep.subr.mxu0 0.0
    %474 = vmatpush1.msra.mxu0 %v325
    %475 = vmatprep.subr.mxu0 0.0
    %476 = vmatpush2.msra.mxu0 0.0
    %477 = vmatprep.subr.mxu0 0.0
    %478 = vmatpush2.msra.mxu0 0.0
    %479 = vmatprep.subr.mxu0 0.0
    %480 = vmatpush2.msra.mxu0 0.0
    %481 = vmatprep.subr.mxu0 0.0
    %482 = vmatpush2.msra.mxu0 0.0
    %483 = vmatprep.subr.mxu0 0.0
    %484 = vmatpush2.msra.mxu0 0.0
    %485 = vmatprep.subr.mxu0 0.0
    %486 = vmatpush2.msra.mxu0 0.0
    %487 = vmatprep.subr.mxu0 0.0
    %488 = vmatpush2.msra.mxu0 0.0
    %489 = vmatprep.subr.mxu0 0.0
    %490 = vmatpush2.msra.mxu0 0.0
    %491 = vmatprep.subr.mxu0 0.0
    %492 = vmatpush2.msra.mxu0 0.0
    %493 = vmatprep.subr.mxu0 0.0
    %494 = vmatpush2.msra.mxu0 0.0
    %495 = vmatprep.subr.mxu0 0.0
    %496 = vmatpush2.msra.mxu0 0.0
    %497 = vmatprep.subr.mxu0 0.0
    %498 = vmatpush2.msra.mxu0 0.0
    %499 = vmatprep.subr.mxu0 0.0
    %500 = vmatpush2.msra.mxu0 0.0
    %501 = vmatprep.subr.mxu0 0.0
    %502 = vmatpush2.msra.mxu0 0.0
    %503 = vmatprep.subr.mxu0 0.0
    %504 = vmatpush2.msra.mxu0 0.0
    %505 = vmatprep.subr.mxu0 0.0
    %506 = vmatpush2.msra.mxu0 0.0
    %507 = vmatprep.mubr.f32.mxu0 0.0
    %508 = vmatmul.mubr.f32.gmra.mxu0 %v206
    %v509 = vpop.f32.mrf.mxu0
    %v510 = vadd.f32 %v425, %v509
    %v511 = vpop.f32.mrf.mxu0
    %512 = vmatprep.mubr.f32.mxu0 0.0
    %513 = vmatmul.mubr.f32.gmra.mxu0 %v211
    %v514 = vpop.f32.mrf.mxu0
    %v515 = vadd.f32 %v430, %v514
    %v516 = vpop.f32.mrf.mxu0
    %517 = vmatprep.mubr.f32.mxu0 0.0
    %518 = vmatmul.mubr.f32.gmra.mxu0 %v216
    %v519 = vpop.f32.mrf.mxu0
    %v520 = vadd.f32 %v435, %v519
    %v521 = vpop.f32.mrf.mxu0
    %522 = vmatprep.mubr.f32.mxu0 0.0
    %523 = vmatmul.mubr.f32.gmra.mxu0 %v221
    %v524 = vpop.f32.mrf.mxu0
    %v525 = vadd.f32 %v440, %v524
    %v526 = vpop.f32.mrf.mxu0
    %527 = vdwg.mxu0
    %s528 = scalar_lea.vmem [#allocation5], 256
    %v529 = vld [vmem:[%s528] sm:$0xff]
    %v530 = vld [vmem:[%s528 + $0x8] sm:$0xff]
    %v531 = vld [vmem:[%s528 + $0x10] sm:$0xff]
    %v532 = vld [vmem:[%s528 + $0x18] sm:$0xff]
    %v533 = vld [vmem:[%s528 + $0x20] sm:$0xff]
    %v534 = vld [vmem:[%s528 + $0x28] sm:$0xff]
    %v535 = vld [vmem:[%s528 + $0x30] sm:$0xff]
    %v536 = vld [vmem:[%s528 + $0x38] sm:$0xff]
    %v537 = vld [vmem:[%s528 + $0x40] sm:$0xff]
    %v538 = vld [vmem:[%s528 + $0x48] sm:$0xff]
    %v539 = vld [vmem:[%s528 + $0x50] sm:$0xff]
    %v540 = vld [vmem:[%s528 + $0x58] sm:$0xff]
    %v541 = vld [vmem:[%s528 + $0x60] sm:$0xff]
    %v542 = vld [vmem:[%s528 + $0x68] sm:$0xff]
    %v543 = vld [vmem:[%s528 + $0x70] sm:$0xff]
    %v544 = vld [vmem:[%s528 + $0x78] sm:$0xff]
    %545 = vmatprep.subr.mxu0 0.0
    %546 = vmatpush1.msra.mxu0 %v544
    %547 = vmatprep.subr.mxu0 0.0
    %548 = vmatpush1.msra.mxu0 %v543
    %549 = vmatprep.subr.mxu0 0.0
    %550 = vmatpush1.msra.mxu0 %v542
    %551 = vmatprep.subr.mxu0 0.0
    %552 = vmatpush1.msra.mxu0 %v541
    %553 = vmatprep.subr.mxu0 0.0
    %554 = vmatpush1.msra.mxu0 %v540
    %555 = vmatprep.subr.mxu0 0.0
    %556 = vmatpush1.msra.mxu0 %v539
    %557 = vmatprep.subr.mxu0 0.0
    %558 = vmatpush1.msra.mxu0 %v538
    %559 = vmatprep.subr.mxu0 0.0
    %560 = vmatpush1.msra.mxu0 %v537
    %561 = vmatprep.subr.mxu0 0.0
    %562 = vmatpush1.msra.mxu0 %v536
    %563 = vmatprep.subr.mxu0 0.0
    %564 = vmatpush1.msra.mxu0 %v535
    %565 = vmatprep.subr.mxu0 0.0
    %566 = vmatpush1.msra.mxu0 %v534
    %567 = vmatprep.subr.mxu0 0.0
    %568 = vmatpush1.msra.mxu0 %v533
    %569 = vmatprep.subr.mxu0 0.0
    %570 = vmatpush1.msra.mxu0 %v532
    %571 = vmatprep.subr.mxu0 0.0
    %572 = vmatpush1.msra.mxu0 %v531
    %573 = vmatprep.subr.mxu0 0.0
    %574 = vmatpush1.msra.mxu0 %v530
    %575 = vmatprep.subr.mxu0 0.0
    %576 = vmatpush1.msra.mxu0 %v529
    %577 = vmatprep.subr.mxu0 0.0
    %578 = vmatpush2.msra.mxu0 0.0
    %579 = vmatprep.subr.mxu0 0.0
    %580 = vmatpush2.msra.mxu0 0.0
    %581 = vmatprep.subr.mxu0 0.0
    %582 = vmatpush2.msra.mxu0 0.0
    %583 = vmatprep.subr.mxu0 0.0
    %584 = vmatpush2.msra.mxu0 0.0
    %585 = vmatprep.subr.mxu0 0.0
    %586 = vmatpush2.msra.mxu0 0.0
    %587 = vmatprep.subr.mxu0 0.0
    %588 = vmatpush2.msra.mxu0 0.0
    %589 = vmatprep.subr.mxu0 0.0
    %590 = vmatpush2.msra.mxu0 0.0
    %591 = vmatprep.subr.mxu0 0.0
    %592 = vmatpush2.msra.mxu0 0.0
    %593 = vmatprep.subr.mxu0 0.0
    %594 = vmatpush2.msra.mxu0 0.0
    %595 = vmatprep.subr.mxu0 0.0
    %596 = vmatpush2.msra.mxu0 0.0
    %597 = vmatprep.subr.mxu0 0.0
    %598 = vmatpush2.msra.mxu0 0.0
    %599 = vmatprep.subr.mxu0 0.0
    %600 = vmatpush2.msra.mxu0 0.0
    %601 = vmatprep.subr.mxu0 0.0
    %602 = vmatpush2.msra.mxu0 0.0
    %603 = vmatprep.subr.mxu0 0.0
    %604 = vmatpush2.msra.mxu0 0.0
    %605 = vmatprep.subr.mxu0 0.0
    %606 = vmatpush2.msra.mxu0 0.0
    %607 = vmatprep.subr.mxu0 0.0
    %608 = vmatpush2.msra.mxu0 0.0
    %609 = vmatprep.mubr.f32.mxu0 0.0
    %610 = vmatmul.mubr.f32.gmra.mxu0 %v307
    %v611 = vpop.f32.mrf.mxu0
    %v612 = vadd.f32 0.0, %v611
    %v613 = vpop.f32.mrf.mxu0
    %614 = vmatprep.mubr.f32.mxu0 0.0
    %615 = vmatmul.mubr.f32.gmra.mxu0 %v312
    %v616 = vpop.f32.mrf.mxu0
    %v617 = vadd.f32 0.0, %v616
    %v618 = vpop.f32.mrf.mxu0
    %619 = vmatprep.mubr.f32.mxu0 0.0
    %620 = vmatmul.mubr.f32.gmra.mxu0 %v317
    %v621 = vpop.f32.mrf.mxu0
    %v622 = vadd.f32 0.0, %v621
    %v623 = vpop.f32.mrf.mxu0
    %624 = vmatprep.mubr.f32.mxu0 0.0
    %625 = vmatmul.mubr.f32.gmra.mxu0 %v322
    %v626 = vpop.f32.mrf.mxu0
    %v627 = vadd.f32 0.0, %v626
    %v628 = vpop.f32.mrf.mxu0
    %629 = vdwg.mxu0
    %v630 = vadd.f32 %v510, %v612
    %v631 = vadd.f32 %v515, %v617
    %v632 = vadd.f32 %v520, %v622
    %v633 = vadd.f32 %v525, %v627
    %v634 = vadd.f32 %v630, %v631
    %v635 = vadd.f32 %v634, %v632
    %v636 = vadd.f32 %v635, %v633
    %v637 = vrot.slane %v636, 4
    %v638 = vadd.f32 %v636, %v637
    %v639 = vrot.slane %v638, 2
    %v640 = vadd.f32 %v638, %v639
    %v641 = vrot.slane %v640, 1
    %v642 = vadd.f32 %v640, %v641
    %v643 = vmul.f32 %v630, %v630
    %v644 = vmul.f32 %v631, %v631
    %v645 = vmul.f32 %v632, %v632
    %v646 = vmul.f32 %v633, %v633
    %v647 = vadd.f32 %v643, %v644
    %v648 = vadd.f32 %v647, %v645
    %v649 = vadd.f32 %v648, %v646
    %v650 = vrot.slane %v649, 4
    %v651 = vadd.f32 %v649, %v650
    %v652 = vrot.slane %v651, 2
    %v653 = vadd.f32 %v651, %v652
    %v654 = vrot.slane %v653, 1
    %v655 = vadd.f32 %v653, %v654
    %v656 = vld [vmem:[#allocation11] sm:$0xff]
    %v657 = vld [vmem:[#allocation11 + $0x8] sm:$0xff]
    %v658 = vld [vmem:[#allocation11 + $0x10] sm:$0xff]
    %v659 = vld [vmem:[#allocation11 + $0x18] sm:$0xff]
    %v660 = vld [vmem:[#allocation11 + $0x20] sm:$0xff]
    %v661 = vld [vmem:[#allocation11 + $0x28] sm:$0xff]
    %v662 = vld [vmem:[#allocation11 + $0x30] sm:$0xff]
    %v663 = vld [vmem:[#allocation11 + $0x38] sm:$0xff]
    %v664 = vld [vmem:[#allocation11 + $0x40] sm:$0xff]
    %v665 = vld [vmem:[#allocation11 + $0x48] sm:$0xff]
    %v666 = vld [vmem:[#allocation11 + $0x50] sm:$0xff]
    %v667 = vld [vmem:[#allocation11 + $0x58] sm:$0xff]
    %v668 = vld [vmem:[#allocation11 + $0x60] sm:$0xff]
    %v669 = vld [vmem:[#allocation11 + $0x68] sm:$0xff]
    %v670 = vld [vmem:[#allocation11 + $0x70] sm:$0xff]
    %v671 = vld [vmem:[#allocation11 + $0x78] sm:$0xff]
    %672 = vmatprep.subr.mxu0 0.0
    %673 = vmatpush1.msra.mxu0 %v671
    %674 = vmatprep.subr.mxu0 0.0
    %675 = vmatpush1.msra.mxu0 %v670
    %676 = vmatprep.subr.mxu0 0.0
    %677 = vmatpush1.msra.mxu0 %v669
    %678 = vmatprep.subr.mxu0 0.0
    %679 = vmatpush1.msra.mxu0 %v668
    %680 = vmatprep.subr.mxu0 0.0
    %681 = vmatpush1.msra.mxu0 %v667
    %682 = vmatprep.subr.mxu0 0.0
    %683 = vmatpush1.msra.mxu0 %v666
    %684 = vmatprep.subr.mxu0 0.0
    %685 = vmatpush1.msra.mxu0 %v665
    %686 = vmatprep.subr.mxu0 0.0
    %687 = vmatpush1.msra.mxu0 %v664
    %688 = vmatprep.subr.mxu0 0.0
    %689 = vmatpush1.msra.mxu0 %v663
    %690 = vmatprep.subr.mxu0 0.0
    %691 = vmatpush1.msra.mxu0 %v662
    %692 = vmatprep.subr.mxu0 0.0
    %693 = vmatpush1.msra.mxu0 %v661
    %694 = vmatprep.subr.mxu0 0.0
    %695 = vmatpush1.msra.mxu0 %v660
    %696 = vmatprep.subr.mxu0 0.0
    %697 = vmatpush1.msra.mxu0 %v659
    %698 = vmatprep.subr.mxu0 0.0
    %699 = vmatpush1.msra.mxu0 %v658
    %700 = vmatprep.subr.mxu0 0.0
    %701 = vmatpush1.msra.mxu0 %v657
    %702 = vmatprep.subr.mxu0 0.0
    %703 = vmatpush1.msra.mxu0 %v656
    %704 = vmatprep.subr.mxu0 0.0
    %705 = vmatpush2.msra.mxu0 0.0
    %706 = vmatprep.subr.mxu0 0.0
    %707 = vmatpush2.msra.mxu0 0.0
    %708 = vmatprep.subr.mxu0 0.0
    %709 = vmatpush2.msra.mxu0 0.0
    %710 = vmatprep.subr.mxu0 0.0
    %711 = vmatpush2.msra.mxu0 0.0
    %712 = vmatprep.subr.mxu0 0.0
    %713 = vmatpush2.msra.mxu0 0.0
    %714 = vmatprep.subr.mxu0 0.0
    %715 = vmatpush2.msra.mxu0 0.0
    %716 = vmatprep.subr.mxu0 0.0
    %717 = vmatpush2.msra.mxu0 0.0
    %718 = vmatprep.subr.mxu0 0.0
    %719 = vmatpush2.msra.mxu0 0.0
    %720 = vmatprep.subr.mxu0 0.0
    %721 = vmatpush2.msra.mxu0 0.0
    %722 = vmatprep.subr.mxu0 0.0
    %723 = vmatpush2.msra.mxu0 0.0
    %724 = vmatprep.subr.mxu0 0.0
    %725 = vmatpush2.msra.mxu0 0.0
    %726 = vmatprep.subr.mxu0 0.0
    %727 = vmatpush2.msra.mxu0 0.0
    %728 = vmatprep.subr.mxu0 0.0
    %729 = vmatpush2.msra.mxu0 0.0
    %730 = vmatprep.subr.mxu0 0.0
    %731 = vmatpush2.msra.mxu0 0.0
    %732 = vmatprep.subr.mxu0 0.0
    %733 = vmatpush2.msra.mxu0 0.0
    %734 = vmatprep.subr.mxu0 0.0
    %735 = vmatpush2.msra.mxu0 0.0
    %736 = vmatprep.mubr.f32.mxu0 0.0
    %737 = vmatmul.mubr.f32.gmra.mxu0 %v642
    %v738 = vpop.f32.mrf.mxu0
    %v739 = vadd.f32 0.0, %v738
    %v740 = vpop.f32.mrf.mxu0
    %741 = vdwg.mxu0
    %v742 = vmul.f32 %v739, 0.001953125
    %743 = vmatprep.subr.mxu0 0.0
    %744 = vmatpush1.msra.mxu0 %v671
    %745 = vmatprep.subr.mxu0 0.0
    %746 = vmatpush1.msra.mxu0 %v670
    %747 = vmatprep.subr.mxu0 0.0
    %748 = vmatpush1.msra.mxu0 %v669
    %749 = vmatprep.subr.mxu0 0.0
    %750 = vmatpush1.msra.mxu0 %v668
    %751 = vmatprep.subr.mxu0 0.0
    %752 = vmatpush1.msra.mxu0 %v667
    %753 = vmatprep.subr.mxu0 0.0
    %754 = vmatpush1.msra.mxu0 %v666
    %755 = vmatprep.subr.mxu0 0.0
    %756 = vmatpush1.msra.mxu0 %v665
    %757 = vmatprep.subr.mxu0 0.0
    %758 = vmatpush1.msra.mxu0 %v664
    %759 = vmatprep.subr.mxu0 0.0
    %760 = vmatpush1.msra.mxu0 %v663
    %761 = vmatprep.subr.mxu0 0.0
    %762 = vmatpush1.msra.mxu0 %v662
    %763 = vmatprep.subr.mxu0 0.0
    %764 = vmatpush1.msra.mxu0 %v661
    %765 = vmatprep.subr.mxu0 0.0
    %766 = vmatpush1.msra.mxu0 %v660
    %767 = vmatprep.subr.mxu0 0.0
    %768 = vmatpush1.msra.mxu0 %v659
    %769 = vmatprep.subr.mxu0 0.0
    %770 = vmatpush1.msra.mxu0 %v658
    %771 = vmatprep.subr.mxu0 0.0
    %772 = vmatpush1.msra.mxu0 %v657
    %773 = vmatprep.subr.mxu0 0.0
    %774 = vmatpush1.msra.mxu0 %v656
    %775 = vmatprep.subr.mxu0 0.0
    %776 = vmatpush2.msra.mxu0 0.0
    %777 = vmatprep.subr.mxu0 0.0
    %778 = vmatpush2.msra.mxu0 0.0
    %779 = vmatprep.subr.mxu0 0.0
    %780 = vmatpush2.msra.mxu0 0.0
    %781 = vmatprep.subr.mxu0 0.0
    %782 = vmatpush2.msra.mxu0 0.0
    %783 = vmatprep.subr.mxu0 0.0
    %784 = vmatpush2.msra.mxu0 0.0
    %785 = vmatprep.subr.mxu0 0.0
    %786 = vmatpush2.msra.mxu0 0.0
    %787 = vmatprep.subr.mxu0 0.0
    %788 = vmatpush2.msra.mxu0 0.0
    %789 = vmatprep.subr.mxu0 0.0
    %790 = vmatpush2.msra.mxu0 0.0
    %791 = vmatprep.subr.mxu0 0.0
    %792 = vmatpush2.msra.mxu0 0.0
    %793 = vmatprep.subr.mxu0 0.0
    %794 = vmatpush2.msra.mxu0 0.0
    %795 = vmatprep.subr.mxu0 0.0
    %796 = vmatpush2.msra.mxu0 0.0
    %797 = vmatprep.subr.mxu0 0.0
    %798 = vmatpush2.msra.mxu0 0.0
    %799 = vmatprep.subr.mxu0 0.0
    %800 = vmatpush2.msra.mxu0 0.0
    %801 = vmatprep.subr.mxu0 0.0
    %802 = vmatpush2.msra.mxu0 0.0
    %803 = vmatprep.subr.mxu0 0.0
    %804 = vmatpush2.msra.mxu0 0.0
    %805 = vmatprep.subr.mxu0 0.0
    %806 = vmatpush2.msra.mxu0 0.0
    %807 = vmatprep.mubr.f32.mxu0 0.0
    %808 = vmatmul.mubr.f32.gmra.mxu0 %v655
    %v809 = vpop.f32.mrf.mxu0
    %v810 = vadd.f32 0.0, %v809
    %v811 = vpop.f32.mrf.mxu0
    %812 = vdwg.mxu0
    %v813 = vmul.f32 %v810, 0.001953125
    %v814 = vmul.f32 %v742, %v742
    %v815 = vsub.f32 %v813, %v814
    %v816 = vadd.f32 %v815, 1e-05
    %v817 = vrsqrt.pop %v816
    %v818 = vld [vmem:[%s6] sm:$0x1]
    %v819 = vmul.f32 %v817, %v818
    %v820 = vlaneseq
    %v821 = vshrl.u32 %v820, 7
    %v822 = vsub.s32 0, %v821
    %v823 = vrot.slane %v742, %v822
    %v824 = vsub.f32 %v630, %v823
    %v825 = vsub.f32 %v631, %v823
    %v826 = vsub.f32 %v632, %v823
    %v827 = vsub.f32 %v633, %v823
    %v828 = vlaneseq
    %v829 = vshrl.u32 %v828, 7
    %v830 = vsub.s32 0, %v829
    %v831 = vrot.slane %v819, %v830
    %v832 = vmul.f32 %v824, %v831
    %v833 = vmul.f32 %v825, %v831
    %v834 = vmul.f32 %v826, %v831
    %v835 = vmul.f32 %v827, %v831
    %v836 = vld [vmem:[%s7] sm:$0x1]
    %v838 = vlaneseq
    %v839 = vshrl.u32 %v838, 7
    %v840 = vsub.s32 0, %v839
    %v841 = vrot.slane %v836, %v840
    %v843 = vadd.f32 %v832, %v841
    %v844 = vadd.f32 %v833, %v841
    %v845 = vadd.f32 %v834, %v841
    %v846 = vadd.f32 %v835, %v841
    %v847 = vmax.f32 %v843, 0.0
    %v848 = vmax.f32 %v844, 0.0
    %v849 = vmax.f32 %v845, 0.0
    %v850 = vmax.f32 %v846, 0.0
    %851 = vmatprep.subr.mxu0 0.0
    %852 = vmatpush1.msra.mxu0 0.0
    %853 = vmatprep.subr.mxu0 0.0
    %854 = vmatpush1.msra.mxu0 0.0
    %855 = vmatprep.subr.mxu0 0.0
    %856 = vmatpush1.msra.mxu0 0.0
    %857 = vmatprep.subr.mxu0 0.0
    %858 = vmatpush1.msra.mxu0 0.0
    %859 = vmatprep.subr.mxu0 0.0
    %860 = vmatpush1.msra.mxu0 0.0
    %861 = vmatprep.subr.mxu0 0.0
    %862 = vmatpush1.msra.mxu0 0.0
    %863 = vmatprep.subr.mxu0 0.0
    %864 = vmatpush1.msra.mxu0 0.0
    %865 = vmatprep.subr.mxu0 0.0
    %866 = vmatpush1.msra.mxu0 0.0
    %867 = vmatprep.subr.mxu0 0.0
    %868 = vmatpush1.msra.mxu0 0.0
    %869 = vmatprep.subr.mxu0 0.0
    %870 = vmatpush1.msra.mxu0 0.0
    %871 = vmatprep.subr.mxu0 0.0
    %872 = vmatpush1.msra.mxu0 0.0
    %873 = vmatprep.subr.mxu0 0.0
    %874 = vmatpush1.msra.mxu0 0.0
    %875 = vmatprep.subr.mxu0 0.0
    %876 = vmatpush1.msra.mxu0 %v850
    %877 = vmatprep.subr.mxu0 0.0
    %878 = vmatpush1.msra.mxu0 %v849
    %879 = vmatprep.subr.mxu0 0.0
    %880 = vmatpush1.msra.mxu0 %v848
    %881 = vmatprep.subr.mxu0 0.0
    %882 = vmatpush1.msra.mxu0 %v847
    %883 = vmatprep.subr.mxu0 0.0
    %884 = vmatpush2.msra.mxu0 0.0
    %885 = vmatprep.subr.mxu0 0.0
    %886 = vmatpush2.msra.mxu0 0.0
    %887 = vmatprep.subr.mxu0 0.0
    %888 = vmatpush2.msra.mxu0 0.0
    %889 = vmatprep.subr.mxu0 0.0
    %890 = vmatpush2.msra.mxu0 0.0
    %891 = vmatprep.subr.mxu0 0.0
    %892 = vmatpush2.msra.mxu0 0.0
    %893 = vmatprep.subr.mxu0 0.0
    %894 = vmatpush2.msra.mxu0 0.0
    %895 = vmatprep.subr.mxu0 0.0
    %896 = vmatpush2.msra.mxu0 0.0
    %897 = vmatprep.subr.mxu0 0.0
    %898 = vmatpush2.msra.mxu0 0.0
    %899 = vmatprep.subr.mxu0 0.0
    %900 = vmatpush2.msra.mxu0 0.0
    %901 = vmatprep.subr.mxu0 0.0
    %902 = vmatpush2.msra.mxu0 0.0
    %903 = vmatprep.subr.mxu0 0.0
    %904 = vmatpush2.msra.mxu0 0.0
    %905 = vmatprep.subr.mxu0 0.0
    %906 = vmatpush2.msra.mxu0 0.0
    %907 = vmatprep.subr.mxu0 0.0
    %908 = vmatpush2.msra.mxu0 0.0
    %909 = vmatprep.subr.mxu0 0.0
    %910 = vmatpush2.msra.mxu0 0.0
    %911 = vmatprep.subr.mxu0 0.0
    %912 = vmatpush2.msra.mxu0 0.0
    %913 = vmatprep.subr.mxu0 0.0
    %914 = vmatpush2.msra.mxu0 0.0
    %915 = vmatprep.mubr.f32.mxu0 0.0
    %916 = vmatmul.mubr.f32.gmra.mxu0 %v128
    %v917 = vpop.f32.mrf.mxu0
    %v918 = vadd.f32 0.0, %v917
    %v919 = vpop.f32.mrf.mxu0
    %920 = vmatprep.mubr.f32.mxu0 0.0
    %921 = vmatmul.mubr.f32.gmra.mxu0 %v131
    %v922 = vpop.f32.mrf.mxu0
    %v923 = vadd.f32 0.0, %v922
    %v924 = vpop.f32.mrf.mxu0
    %925 = vmatprep.mubr.f32.mxu0 0.0
    %926 = vmatmul.mubr.f32.gmra.mxu0 %v134
    %v927 = vpop.f32.mrf.mxu0
    %v928 = vadd.f32 0.0, %v927
    %v929 = vpop.f32.mrf.mxu0
    %930 = vmatprep.mubr.f32.mxu0 0.0
    %931 = vmatmul.mubr.f32.gmra.mxu0 %v137
    %v932 = vpop.f32.mrf.mxu0
    %v933 = vadd.f32 0.0, %v932
    %v934 = vpop.f32.mrf.mxu0
    %935 = vdwg.mxu0
    %936 = vmatprep.subr.mxu0 0.0
    %937 = vmatpush1.msra.mxu0 0.0
    %938 = vmatprep.subr.mxu0 0.0
    %939 = vmatpush1.msra.mxu0 0.0
    %940 = vmatprep.subr.mxu0 0.0
    %941 = vmatpush1.msra.mxu0 0.0
    %942 = vmatprep.subr.mxu0 0.0
    %943 = vmatpush1.msra.mxu0 0.0
    %944 = vmatprep.subr.mxu0 0.0
    %945 = vmatpush1.msra.mxu0 0.0
    %946 = vmatprep.subr.mxu0 0.0
    %947 = vmatpush1.msra.mxu0 0.0
    %948 = vmatprep.subr.mxu0 0.0
    %949 = vmatpush1.msra.mxu0 0.0
    %950 = vmatprep.subr.mxu0 0.0
    %951 = vmatpush1.msra.mxu0 0.0
    %952 = vmatprep.subr.mxu0 0.0
    %953 = vmatpush1.msra.mxu0 0.0
    %954 = vmatprep.subr.mxu0 0.0
    %955 = vmatpush1.msra.mxu0 0.0
    %956 = vmatprep.subr.mxu0 0.0
    %957 = vmatpush1.msra.mxu0 0.0
    %958 = vmatprep.subr.mxu0 0.0
    %959 = vmatpush1.msra.mxu0 0.0
    %960 = vmatprep.subr.mxu0 0.0
    %961 = vmatpush1.msra.mxu0 %v850
    %962 = vmatprep.subr.mxu0 0.0
    %963 = vmatpush1.msra.mxu0 %v849
    %964 = vmatprep.subr.mxu0 0.0
    %965 = vmatpush1.msra.mxu0 %v848
    %966 = vmatprep.subr.mxu0 0.0
    %967 = vmatpush1.msra.mxu0 %v847
    %968 = vmatprep.subr.mxu0 0.0
    %969 = vmatpush2.msra.mxu0 0.0
    %970 = vmatprep.subr.mxu0 0.0
    %971 = vmatpush2.msra.mxu0 0.0
    %972 = vmatprep.subr.mxu0 0.0
    %973 = vmatpush2.msra.mxu0 0.0
    %974 = vmatprep.subr.mxu0 0.0
    %975 = vmatpush2.msra.mxu0 0.0
    %976 = vmatprep.subr.mxu0 0.0
    %977 = vmatpush2.msra.mxu0 0.0
    %978 = vmatprep.subr.mxu0 0.0
    %979 = vmatpush2.msra.mxu0 0.0
    %980 = vmatprep.subr.mxu0 0.0
    %981 = vmatpush2.msra.mxu0 0.0
    %982 = vmatprep.subr.mxu0 0.0
    %983 = vmatpush2.msra.mxu0 0.0
    %984 = vmatprep.subr.mxu0 0.0
    %985 = vmatpush2.msra.mxu0 0.0
    %986 = vmatprep.subr.mxu0 0.0
    %987 = vmatpush2.msra.mxu0 0.0
    %988 = vmatprep.subr.mxu0 0.0
    %989 = vmatpush2.msra.mxu0 0.0
    %990 = vmatprep.subr.mxu0 0.0
    %991 = vmatpush2.msra.mxu0 0.0
    %992 = vmatprep.subr.mxu0 0.0
    %993 = vmatpush2.msra.mxu0 0.0
    %994 = vmatprep.subr.mxu0 0.0
    %995 = vmatpush2.msra.mxu0 0.0
    %996 = vmatprep.subr.mxu0 0.0
    %997 = vmatpush2.msra.mxu0 0.0
    %998 = vmatprep.subr.mxu0 0.0
    %999 = vmatpush2.msra.mxu0 0.0
    %1000 = vmatprep.mubr.f32.mxu0 0.0
    %1001 = vmatmul.mubr.f32.gmra.mxu0 %v229
    %v1002 = vpop.f32.mrf.mxu0
    %v1003 = vadd.f32 0.0, %v1002
    %v1004 = vpop.f32.mrf.mxu0
    %1005 = vmatprep.mubr.f32.mxu0 0.0
    %1006 = vmatmul.mubr.f32.gmra.mxu0 %v232
    %v1007 = vpop.f32.mrf.mxu0
    %v1008 = vadd.f32 0.0, %v1007
    %v1009 = vpop.f32.mrf.mxu0
    %1010 = vmatprep.mubr.f32.mxu0 0.0
    %1011 = vmatmul.mubr.f32.gmra.mxu0 %v235
    %v1012 = vpop.f32.mrf.mxu0
    %v1013 = vadd.f32 0.0, %v1012
    %v1014 = vpop.f32.mrf.mxu0
    %1015 = vmatprep.mubr.f32.mxu0 0.0
    %1016 = vmatmul.mubr.f32.gmra.mxu0 %v238
    %v1017 = vpop.f32.mrf.mxu0
    %v1018 = vadd.f32 0.0, %v1017
    %v1019 = vpop.f32.mrf.mxu0
    %1020 = vdwg.mxu0
    %v1021 = vld [vmem:[#allocation7] sm:$0xff]
    %v1022 = vld [vmem:[#allocation7 + $0x8] sm:$0xff]
    %v1023 = vld [vmem:[#allocation7 + $0x10] sm:$0xff]
    %v1024 = vld [vmem:[#allocation7 + $0x18] sm:$0xff]
    %v1025 = vld [vmem:[#allocation7 + $0x20] sm:$0xff]
    %v1026 = vld [vmem:[#allocation7 + $0x28] sm:$0xff]
    %v1027 = vld [vmem:[#allocation7 + $0x30] sm:$0xff]
    %v1028 = vld [vmem:[#allocation7 + $0x38] sm:$0xff]
    %v1029 = vld [vmem:[#allocation7 + $0x40] sm:$0xff]
    %v1030 = vld [vmem:[#allocation7 + $0x48] sm:$0xff]
    %v1031 = vld [vmem:[#allocation7 + $0x50] sm:$0xff]
    %v1032 = vld [vmem:[#allocation7 + $0x58] sm:$0xff]
    %v1033 = vld [vmem:[#allocation7 + $0x60] sm:$0xff]
    %v1034 = vld [vmem:[#allocation7 + $0x68] sm:$0xff]
    %v1035 = vld [vmem:[#allocation7 + $0x70] sm:$0xff]
    %v1036 = vld [vmem:[#allocation7 + $0x78] sm:$0xff]
    %s1037 = scalar_lea.vmem [#allocation7], 128
    %v1038 = vld [vmem:[%s1037] sm:$0xff]
    %v1039 = vld [vmem:[%s1037 + $0x8] sm:$0xff]
    %v1040 = vld [vmem:[%s1037 + $0x10] sm:$0xff]
    %v1041 = vld [vmem:[%s1037 + $0x18] sm:$0xff]
    %v1042 = vld [vmem:[%s1037 + $0x20] sm:$0xff]
    %v1043 = vld [vmem:[%s1037 + $0x28] sm:$0xff]
    %v1044 = vld [vmem:[%s1037 + $0x30] sm:$0xff]
    %v1045 = vld [vmem:[%s1037 + $0x38] sm:$0xff]
    %v1046 = vld [vmem:[%s1037 + $0x40] sm:$0xff]
    %v1047 = vld [vmem:[%s1037 + $0x48] sm:$0xff]
    %v1048 = vld [vmem:[%s1037 + $0x50] sm:$0xff]
    %v1049 = vld [vmem:[%s1037 + $0x58] sm:$0xff]
    %v1050 = vld [vmem:[%s1037 + $0x60] sm:$0xff]
    %v1051 = vld [vmem:[%s1037 + $0x68] sm:$0xff]
    %v1052 = vld [vmem:[%s1037 + $0x70] sm:$0xff]
    %v1053 = vld [vmem:[%s1037 + $0x78] sm:$0xff]
    %1054 = vmatprep.subr.mxu0 0.0
    %1055 = vmatpush1.msra.mxu0 %v1053
    %1056 = vmatprep.subr.mxu0 0.0
    %1057 = vmatpush1.msra.mxu0 %v1052
    %1058 = vmatprep.subr.mxu0 0.0
    %1059 = vmatpush1.msra.mxu0 %v1051
    %1060 = vmatprep.subr.mxu0 0.0
    %1061 = vmatpush1.msra.mxu0 %v1050
    %1062 = vmatprep.subr.mxu0 0.0
    %1063 = vmatpush1.msra.mxu0 %v1049
    %1064 = vmatprep.subr.mxu0 0.0
    %1065 = vmatpush1.msra.mxu0 %v1048
    %1066 = vmatprep.subr.mxu0 0.0
    %1067 = vmatpush1.msra.mxu0 %v1047
    %1068 = vmatprep.subr.mxu0 0.0
    %1069 = vmatpush1.msra.mxu0 %v1046
    %1070 = vmatprep.subr.mxu0 0.0
    %1071 = vmatpush1.msra.mxu0 %v1045
    %1072 = vmatprep.subr.mxu0 0.0
    %1073 = vmatpush1.msra.mxu0 %v1044
    %1074 = vmatprep.subr.mxu0 0.0
    %1075 = vmatpush1.msra.mxu0 %v1043
    %1076 = vmatprep.subr.mxu0 0.0
    %1077 = vmatpush1.msra.mxu0 %v1042
    %1078 = vmatprep.subr.mxu0 0.0
    %1079 = vmatpush1.msra.mxu0 %v1041
    %1080 = vmatprep.subr.mxu0 0.0
    %1081 = vmatpush1.msra.mxu0 %v1040
    %1082 = vmatprep.subr.mxu0 0.0
    %1083 = vmatpush1.msra.mxu0 %v1039
    %1084 = vmatprep.subr.mxu0 0.0
    %1085 = vmatpush1.msra.mxu0 %v1038
    %1086 = vmatprep.subr.mxu0 0.0
    %1087 = vmatpush2.msra.mxu0 0.0
    %1088 = vmatprep.subr.mxu0 0.0
    %1089 = vmatpush2.msra.mxu0 0.0
    %1090 = vmatprep.subr.mxu0 0.0
    %1091 = vmatpush2.msra.mxu0 0.0
    %1092 = vmatprep.subr.mxu0 0.0
    %1093 = vmatpush2.msra.mxu0 0.0
    %1094 = vmatprep.subr.mxu0 0.0
    %1095 = vmatpush2.msra.mxu0 0.0
    %1096 = vmatprep.subr.mxu0 0.0
    %1097 = vmatpush2.msra.mxu0 0.0
    %1098 = vmatprep.subr.mxu0 0.0
    %1099 = vmatpush2.msra.mxu0 0.0
    %1100 = vmatprep.subr.mxu0 0.0
    %1101 = vmatpush2.msra.mxu0 0.0
    %1102 = vmatprep.subr.mxu0 0.0
    %1103 = vmatpush2.msra.mxu0 0.0
    %1104 = vmatprep.subr.mxu0 0.0
    %1105 = vmatpush2.msra.mxu0 0.0
    %1106 = vmatprep.subr.mxu0 0.0
    %1107 = vmatpush2.msra.mxu0 0.0
    %1108 = vmatprep.subr.mxu0 0.0
    %1109 = vmatpush2.msra.mxu0 0.0
    %1110 = vmatprep.subr.mxu0 0.0
    %1111 = vmatpush2.msra.mxu0 0.0
    %1112 = vmatprep.subr.mxu0 0.0
    %1113 = vmatpush2.msra.mxu0 0.0
    %1114 = vmatprep.subr.mxu0 0.0
    %1115 = vmatpush2.msra.mxu0 0.0
    %1116 = vmatprep.subr.mxu0 0.0
    %1117 = vmatpush2.msra.mxu0 0.0
    %1118 = vmatprep.mubr.f32.mxu0 0.0
    %1119 = vmatmul.mubr.f32.gmra.mxu0 %v847
    %v1120 = vpop.f32.mrf.mxu0
    %v1121 = vadd.f32 0.0, %v1120
    %v1122 = vpop.f32.mrf.mxu0
    %1123 = vmatprep.mubr.f32.mxu0 0.0
    %1124 = vmatmul.mubr.f32.gmra.mxu0 %v848
    %v1125 = vpop.f32.mrf.mxu0
    %v1126 = vadd.f32 0.0, %v1125
    %v1127 = vpop.f32.mrf.mxu0
    %1128 = vmatprep.mubr.f32.mxu0 0.0
    %1129 = vmatmul.mubr.f32.gmra.mxu0 %v849
    %v1130 = vpop.f32.mrf.mxu0
    %v1131 = vadd.f32 0.0, %v1130
    %v1132 = vpop.f32.mrf.mxu0
    %1133 = vmatprep.mubr.f32.mxu0 0.0
    %1134 = vmatmul.mubr.f32.gmra.mxu0 %v850
    %v1135 = vpop.f32.mrf.mxu0
    %v1136 = vadd.f32 0.0, %v1135
    %v1137 = vpop.f32.mrf.mxu0
    %1138 = vdwg.mxu0
    %1139 = vmatprep.subr.mxu0 0.0
    %1140 = vmatpush1.msra.mxu0 %v1036
    %1141 = vmatprep.subr.mxu0 0.0
    %1142 = vmatpush1.msra.mxu0 %v1035
    %1143 = vmatprep.subr.mxu0 0.0
    %1144 = vmatpush1.msra.mxu0 %v1034
    %1145 = vmatprep.subr.mxu0 0.0
    %1146 = vmatpush1.msra.mxu0 %v1033
    %1147 = vmatprep.subr.mxu0 0.0
    %1148 = vmatpush1.msra.mxu0 %v1032
    %1149 = vmatprep.subr.mxu0 0.0
    %1150 = vmatpush1.msra.mxu0 %v1031
    %1151 = vmatprep.subr.mxu0 0.0
    %1152 = vmatpush1.msra.mxu0 %v1030
    %1153 = vmatprep.subr.mxu0 0.0
    %1154 = vmatpush1.msra.mxu0 %v1029
    %1155 = vmatprep.subr.mxu0 0.0
    %1156 = vmatpush1.msra.mxu0 %v1028
    %1157 = vmatprep.subr.mxu0 0.0
    %1158 = vmatpush1.msra.mxu0 %v1027
    %1159 = vmatprep.subr.mxu0 0.0
    %1160 = vmatpush1.msra.mxu0 %v1026
    %1161 = vmatprep.subr.mxu0 0.0
    %1162 = vmatpush1.msra.mxu0 %v1025
    %1163 = vmatprep.subr.mxu0 0.0
    %1164 = vmatpush1.msra.mxu0 %v1024
    %1165 = vmatprep.subr.mxu0 0.0
    %1166 = vmatpush1.msra.mxu0 %v1023
    %1167 = vmatprep.subr.mxu0 0.0
    %1168 = vmatpush1.msra.mxu0 %v1022
    %1169 = vmatprep.subr.mxu0 0.0
    %1170 = vmatpush1.msra.mxu0 %v1021
    %1171 = vmatprep.subr.mxu0 0.0
    %1172 = vmatpush2.msra.mxu0 0.0
    %1173 = vmatprep.subr.mxu0 0.0
    %1174 = vmatpush2.msra.mxu0 0.0
    %1175 = vmatprep.subr.mxu0 0.0
    %1176 = vmatpush2.msra.mxu0 0.0
    %1177 = vmatprep.subr.mxu0 0.0
    %1178 = vmatpush2.msra.mxu0 0.0
    %1179 = vmatprep.subr.mxu0 0.0
    %1180 = vmatpush2.msra.mxu0 0.0
    %1181 = vmatprep.subr.mxu0 0.0
    %1182 = vmatpush2.msra.mxu0 0.0
    %1183 = vmatprep.subr.mxu0 0.0
    %1184 = vmatpush2.msra.mxu0 0.0
    %1185 = vmatprep.subr.mxu0 0.0
    %1186 = vmatpush2.msra.mxu0 0.0
    %1187 = vmatprep.subr.mxu0 0.0
    %1188 = vmatpush2.msra.mxu0 0.0
    %1189 = vmatprep.subr.mxu0 0.0
    %1190 = vmatpush2.msra.mxu0 0.0
    %1191 = vmatprep.subr.mxu0 0.0
    %1192 = vmatpush2.msra.mxu0 0.0
    %1193 = vmatprep.subr.mxu0 0.0
    %1194 = vmatpush2.msra.mxu0 0.0
    %1195 = vmatprep.subr.mxu0 0.0
    %1196 = vmatpush2.msra.mxu0 0.0
    %1197 = vmatprep.subr.mxu0 0.0
    %1198 = vmatpush2.msra.mxu0 0.0
    %1199 = vmatprep.subr.mxu0 0.0
    %1200 = vmatpush2.msra.mxu0 0.0
    %1201 = vmatprep.subr.mxu0 0.0
    %1202 = vmatpush2.msra.mxu0 0.0
    %1203 = vmatprep.mubr.f32.mxu0 0.0
    %1204 = vmatmul.mubr.f32.gmra.mxu0 %v918
    %v1205 = vpop.f32.mrf.mxu0
    %v1206 = vadd.f32 %v1121, %v1205
    %v1207 = vpop.f32.mrf.mxu0
    %1208 = vmatprep.mubr.f32.mxu0 0.0
    %1209 = vmatmul.mubr.f32.gmra.mxu0 %v923
    %v1210 = vpop.f32.mrf.mxu0
    %v1211 = vadd.f32 %v1126, %v1210
    %v1212 = vpop.f32.mrf.mxu0
    %1213 = vmatprep.mubr.f32.mxu0 0.0
    %1214 = vmatmul.mubr.f32.gmra.mxu0 %v928
    %v1215 = vpop.f32.mrf.mxu0
    %v1216 = vadd.f32 %v1131, %v1215
    %v1217 = vpop.f32.mrf.mxu0
    %1218 = vmatprep.mubr.f32.mxu0 0.0
    %1219 = vmatmul.mubr.f32.gmra.mxu0 %v933
    %v1220 = vpop.f32.mrf.mxu0
    %v1221 = vadd.f32 %v1136, %v1220
    %v1222 = vpop.f32.mrf.mxu0
    %1223 = vdwg.mxu0
    %s1224 = scalar_lea.vmem [#allocation7], 256
    %v1225 = vld [vmem:[%s1224] sm:$0xff]
    %v1226 = vld [vmem:[%s1224 + $0x8] sm:$0xff]
    %v1227 = vld [vmem:[%s1224 + $0x10] sm:$0xff]
    %v1228 = vld [vmem:[%s1224 + $0x18] sm:$0xff]
    %v1229 = vld [vmem:[%s1224 + $0x20] sm:$0xff]
    %v1230 = vld [vmem:[%s1224 + $0x28] sm:$0xff]
    %v1231 = vld [vmem:[%s1224 + $0x30] sm:$0xff]
    %v1232 = vld [vmem:[%s1224 + $0x38] sm:$0xff]
    %v1233 = vld [vmem:[%s1224 + $0x40] sm:$0xff]
    %v1234 = vld [vmem:[%s1224 + $0x48] sm:$0xff]
    %v1235 = vld [vmem:[%s1224 + $0x50] sm:$0xff]
    %v1236 = vld [vmem:[%s1224 + $0x58] sm:$0xff]
    %v1237 = vld [vmem:[%s1224 + $0x60] sm:$0xff]
    %v1238 = vld [vmem:[%s1224 + $0x68] sm:$0xff]
    %v1239 = vld [vmem:[%s1224 + $0x70] sm:$0xff]
    %v1240 = vld [vmem:[%s1224 + $0x78] sm:$0xff]
    %1241 = vmatprep.subr.mxu0 0.0
    %1242 = vmatpush1.msra.mxu0 %v1240
    %1243 = vmatprep.subr.mxu0 0.0
    %1244 = vmatpush1.msra.mxu0 %v1239
    %1245 = vmatprep.subr.mxu0 0.0
    %1246 = vmatpush1.msra.mxu0 %v1238
    %1247 = vmatprep.subr.mxu0 0.0
    %1248 = vmatpush1.msra.mxu0 %v1237
    %1249 = vmatprep.subr.mxu0 0.0
    %1250 = vmatpush1.msra.mxu0 %v1236
    %1251 = vmatprep.subr.mxu0 0.0
    %1252 = vmatpush1.msra.mxu0 %v1235
    %1253 = vmatprep.subr.mxu0 0.0
    %1254 = vmatpush1.msra.mxu0 %v1234
    %1255 = vmatprep.subr.mxu0 0.0
    %1256 = vmatpush1.msra.mxu0 %v1233
    %1257 = vmatprep.subr.mxu0 0.0
    %1258 = vmatpush1.msra.mxu0 %v1232
    %1259 = vmatprep.subr.mxu0 0.0
    %1260 = vmatpush1.msra.mxu0 %v1231
    %1261 = vmatprep.subr.mxu0 0.0
    %1262 = vmatpush1.msra.mxu0 %v1230
    %1263 = vmatprep.subr.mxu0 0.0
    %1264 = vmatpush1.msra.mxu0 %v1229
    %1265 = vmatprep.subr.mxu0 0.0
    %1266 = vmatpush1.msra.mxu0 %v1228
    %1267 = vmatprep.subr.mxu0 0.0
    %1268 = vmatpush1.msra.mxu0 %v1227
    %1269 = vmatprep.subr.mxu0 0.0
    %1270 = vmatpush1.msra.mxu0 %v1226
    %1271 = vmatprep.subr.mxu0 0.0
    %1272 = vmatpush1.msra.mxu0 %v1225
    %1273 = vmatprep.subr.mxu0 0.0
    %1274 = vmatpush2.msra.mxu0 0.0
    %1275 = vmatprep.subr.mxu0 0.0
    %1276 = vmatpush2.msra.mxu0 0.0
    %1277 = vmatprep.subr.mxu0 0.0
    %1278 = vmatpush2.msra.mxu0 0.0
    %1279 = vmatprep.subr.mxu0 0.0
    %1280 = vmatpush2.msra.mxu0 0.0
    %1281 = vmatprep.subr.mxu0 0.0
    %1282 = vmatpush2.msra.mxu0 0.0
    %1283 = vmatprep.subr.mxu0 0.0
    %1284 = vmatpush2.msra.mxu0 0.0
    %1285 = vmatprep.subr.mxu0 0.0
    %1286 = vmatpush2.msra.mxu0 0.0
    %1287 = vmatprep.subr.mxu0 0.0
    %1288 = vmatpush2.msra.mxu0 0.0
    %1289 = vmatprep.subr.mxu0 0.0
    %1290 = vmatpush2.msra.mxu0 0.0
    %1291 = vmatprep.subr.mxu0 0.0
    %1292 = vmatpush2.msra.mxu0 0.0
    %1293 = vmatprep.subr.mxu0 0.0
    %1294 = vmatpush2.msra.mxu0 0.0
    %1295 = vmatprep.subr.mxu0 0.0
    %1296 = vmatpush2.msra.mxu0 0.0
    %1297 = vmatprep.subr.mxu0 0.0
    %1298 = vmatpush2.msra.mxu0 0.0
    %1299 = vmatprep.subr.mxu0 0.0
    %1300 = vmatpush2.msra.mxu0 0.0
    %1301 = vmatprep.subr.mxu0 0.0
    %1302 = vmatpush2.msra.mxu0 0.0
    %1303 = vmatprep.subr.mxu0 0.0
    %1304 = vmatpush2.msra.mxu0 0.0
    %1305 = vmatprep.mubr.f32.mxu0 0.0
    %1306 = vmatmul.mubr.f32.gmra.mxu0 %v1003
    %v1307 = vpop.f32.mrf.mxu0
    %v1308 = vadd.f32 0.0, %v1307
    %v1309 = vpop.f32.mrf.mxu0
    %1310 = vmatprep.mubr.f32.mxu0 0.0
    %1311 = vmatmul.mubr.f32.gmra.mxu0 %v1008
    %v1312 = vpop.f32.mrf.mxu0
    %v1313 = vadd.f32 0.0, %v1312
    %v1314 = vpop.f32.mrf.mxu0
    %1315 = vmatprep.mubr.f32.mxu0 0.0
    %1316 = vmatmul.mubr.f32.gmra.mxu0 %v1013
    %v1317 = vpop.f32.mrf.mxu0
    %v1318 = vadd.f32 0.0, %v1317
    %v1319 = vpop.f32.mrf.mxu0
    %1320 = vmatprep.mubr.f32.mxu0 0.0
    %1321 = vmatmul.mubr.f32.gmra.mxu0 %v1018
    %v1322 = vpop.f32.mrf.mxu0
    %v1323 = vadd.f32 0.0, %v1322
    %v1324 = vpop.f32.mrf.mxu0
    %1325 = vdwg.mxu0
    %v1326 = vadd.f32 %v1206, %v1308
    %v1327 = vadd.f32 %v1211, %v1313
    %v1328 = vadd.f32 %v1216, %v1318
    %v1329 = vadd.f32 %v1221, %v1323
    %v1330 = vadd.f32 %v1326, %v1327
    %v1331 = vadd.f32 %v1330, %v1328
    %v1332 = vadd.f32 %v1331, %v1329
    %v1333 = vrot.slane %v1332, 4
    %v1334 = vadd.f32 %v1332, %v1333
    %v1335 = vrot.slane %v1334, 2
    %v1336 = vadd.f32 %v1334, %v1335
    %v1337 = vrot.slane %v1336, 1
    %v1338 = vadd.f32 %v1336, %v1337
    %v1339 = vmul.f32 %v1326, %v1326
    %v1340 = vmul.f32 %v1327, %v1327
    %v1341 = vmul.f32 %v1328, %v1328
    %v1342 = vmul.f32 %v1329, %v1329
    %v1343 = vadd.f32 %v1339, %v1340
    %v1344 = vadd.f32 %v1343, %v1341
    %v1345 = vadd.f32 %v1344, %v1342
    %v1346 = vrot.slane %v1345, 4
    %v1347 = vadd.f32 %v1345, %v1346
    %v1348 = vrot.slane %v1347, 2
    %v1349 = vadd.f32 %v1347, %v1348
    %v1350 = vrot.slane %v1349, 1
    %v1351 = vadd.f32 %v1349, %v1350
    %1352 = vmatprep.subr.mxu0 0.0
    %1353 = vmatpush1.msra.mxu0 %v671
    %1354 = vmatprep.subr.mxu0 0.0
    %1355 = vmatpush1.msra.mxu0 %v670
    %1356 = vmatprep.subr.mxu0 0.0
    %1357 = vmatpush1.msra.mxu0 %v669
    %1358 = vmatprep.subr.mxu0 0.0
    %1359 = vmatpush1.msra.mxu0 %v668
    %1360 = vmatprep.subr.mxu0 0.0
    %1361 = vmatpush1.msra.mxu0 %v667
    %1362 = vmatprep.subr.mxu0 0.0
    %1363 = vmatpush1.msra.mxu0 %v666
    %1364 = vmatprep.subr.mxu0 0.0
    %1365 = vmatpush1.msra.mxu0 %v665
    %1366 = vmatprep.subr.mxu0 0.0
    %1367 = vmatpush1.msra.mxu0 %v664
    %1368 = vmatprep.subr.mxu0 0.0
    %1369 = vmatpush1.msra.mxu0 %v663
    %1370 = vmatprep.subr.mxu0 0.0
    %1371 = vmatpush1.msra.mxu0 %v662
    %1372 = vmatprep.subr.mxu0 0.0
    %1373 = vmatpush1.msra.mxu0 %v661
    %1374 = vmatprep.subr.mxu0 0.0
    %1375 = vmatpush1.msra.mxu0 %v660
    %1376 = vmatprep.subr.mxu0 0.0
    %1377 = vmatpush1.msra.mxu0 %v659
    %1378 = vmatprep.subr.mxu0 0.0
    %1379 = vmatpush1.msra.mxu0 %v658
    %1380 = vmatprep.subr.mxu0 0.0
    %1381 = vmatpush1.msra.mxu0 %v657
    %1382 = vmatprep.subr.mxu0 0.0
    %1383 = vmatpush1.msra.mxu0 %v656
    %1384 = vmatprep.subr.mxu0 0.0
    %1385 = vmatpush2.msra.mxu0 0.0
    %1386 = vmatprep.subr.mxu0 0.0
    %1387 = vmatpush2.msra.mxu0 0.0
    %1388 = vmatprep.subr.mxu0 0.0
    %1389 = vmatpush2.msra.mxu0 0.0
    %1390 = vmatprep.subr.mxu0 0.0
    %1391 = vmatpush2.msra.mxu0 0.0
    %1392 = vmatprep.subr.mxu0 0.0
    %1393 = vmatpush2.msra.mxu0 0.0
    %1394 = vmatprep.subr.mxu0 0.0
    %1395 = vmatpush2.msra.mxu0 0.0
    %1396 = vmatprep.subr.mxu0 0.0
    %1397 = vmatpush2.msra.mxu0 0.0
    %1398 = vmatprep.subr.mxu0 0.0
    %1399 = vmatpush2.msra.mxu0 0.0
    %1400 = vmatprep.subr.mxu0 0.0
    %1401 = vmatpush2.msra.mxu0 0.0
    %1402 = vmatprep.subr.mxu0 0.0
    %1403 = vmatpush2.msra.mxu0 0.0
    %1404 = vmatprep.subr.mxu0 0.0
    %1405 = vmatpush2.msra.mxu0 0.0
    %1406 = vmatprep.subr.mxu0 0.0
    %1407 = vmatpush2.msra.mxu0 0.0
    %1408 = vmatprep.subr.mxu0 0.0
    %1409 = vmatpush2.msra.mxu0 0.0
    %1410 = vmatprep.subr.mxu0 0.0
    %1411 = vmatpush2.msra.mxu0 0.0
    %1412 = vmatprep.subr.mxu0 0.0
    %1413 = vmatpush2.msra.mxu0 0.0
    %1414 = vmatprep.subr.mxu0 0.0
    %1415 = vmatpush2.msra.mxu0 0.0
    %1416 = vmatprep.mubr.f32.mxu0 0.0
    %1417 = vmatmul.mubr.f32.gmra.mxu0 %v1338
    %v1418 = vpop.f32.mrf.mxu0
    %v1419 = vadd.f32 0.0, %v1418
    %v1420 = vpop.f32.mrf.mxu0
    %1421 = vdwg.mxu0
    %v1422 = vmul.f32 %v1419, 0.001953125
    %1423 = vmatprep.subr.mxu0 0.0
    %1424 = vmatpush1.msra.mxu0 %v671
    %1425 = vmatprep.subr.mxu0 0.0
    %1426 = vmatpush1.msra.mxu0 %v670
    %1427 = vmatprep.subr.mxu0 0.0
    %1428 = vmatpush1.msra.mxu0 %v669
    %1429 = vmatprep.subr.mxu0 0.0
    %1430 = vmatpush1.msra.mxu0 %v668
    %1431 = vmatprep.subr.mxu0 0.0
    %1432 = vmatpush1.msra.mxu0 %v667
    %1433 = vmatprep.subr.mxu0 0.0
    %1434 = vmatpush1.msra.mxu0 %v666
    %1435 = vmatprep.subr.mxu0 0.0
    %1436 = vmatpush1.msra.mxu0 %v665
    %1437 = vmatprep.subr.mxu0 0.0
    %1438 = vmatpush1.msra.mxu0 %v664
    %1439 = vmatprep.subr.mxu0 0.0
    %1440 = vmatpush1.msra.mxu0 %v663
    %1441 = vmatprep.subr.mxu0 0.0
    %1442 = vmatpush1.msra.mxu0 %v662
    %1443 = vmatprep.subr.mxu0 0.0
    %1444 = vmatpush1.msra.mxu0 %v661
    %1445 = vmatprep.subr.mxu0 0.0
    %1446 = vmatpush1.msra.mxu0 %v660
    %1447 = vmatprep.subr.mxu0 0.0
    %1448 = vmatpush1.msra.mxu0 %v659
    %1449 = vmatprep.subr.mxu0 0.0
    %1450 = vmatpush1.msra.mxu0 %v658
    %1451 = vmatprep.subr.mxu0 0.0
    %1452 = vmatpush1.msra.mxu0 %v657
    %1453 = vmatprep.subr.mxu0 0.0
    %1454 = vmatpush1.msra.mxu0 %v656
    %1455 = vmatprep.subr.mxu0 0.0
    %1456 = vmatpush2.msra.mxu0 0.0
    %1457 = vmatprep.subr.mxu0 0.0
    %1458 = vmatpush2.msra.mxu0 0.0
    %1459 = vmatprep.subr.mxu0 0.0
    %1460 = vmatpush2.msra.mxu0 0.0
    %1461 = vmatprep.subr.mxu0 0.0
    %1462 = vmatpush2.msra.mxu0 0.0
    %1463 = vmatprep.subr.mxu0 0.0
    %1464 = vmatpush2.msra.mxu0 0.0
    %1465 = vmatprep.subr.mxu0 0.0
    %1466 = vmatpush2.msra.mxu0 0.0
    %1467 = vmatprep.subr.mxu0 0.0
    %1468 = vmatpush2.msra.mxu0 0.0
    %1469 = vmatprep.subr.mxu0 0.0
    %1470 = vmatpush2.msra.mxu0 0.0
    %1471 = vmatprep.subr.mxu0 0.0
    %1472 = vmatpush2.msra.mxu0 0.0
    %1473 = vmatprep.subr.mxu0 0.0
    %1474 = vmatpush2.msra.mxu0 0.0
    %1475 = vmatprep.subr.mxu0 0.0
    %1476 = vmatpush2.msra.mxu0 0.0
    %1477 = vmatprep.subr.mxu0 0.0
    %1478 = vmatpush2.msra.mxu0 0.0
    %1479 = vmatprep.subr.mxu0 0.0
    %1480 = vmatpush2.msra.mxu0 0.0
    %1481 = vmatprep.subr.mxu0 0.0
    %1482 = vmatpush2.msra.mxu0 0.0
    %1483 = vmatprep.subr.mxu0 0.0
    %1484 = vmatpush2.msra.mxu0 0.0
    %1485 = vmatprep.subr.mxu0 0.0
    %1486 = vmatpush2.msra.mxu0 0.0
    %1487 = vmatprep.mubr.f32.mxu0 0.0
    %1488 = vmatmul.mubr.f32.gmra.mxu0 %v1351
    %v1489 = vpop.f32.mrf.mxu0
    %v1490 = vadd.f32 0.0, %v1489
    %v1491 = vpop.f32.mrf.mxu0
    %1492 = vdwg.mxu0
    %v1493 = vmul.f32 %v1490, 0.001953125
    %v1494 = vmul.f32 %v1422, %v1422
    %v1495 = vsub.f32 %v1493, %v1494
    %v1496 = vadd.f32 %v1495, 1e-05
    %v1497 = vrsqrt.pop %v1496
    %v1498 = vld [vmem:[%s8] sm:$0x1]
    %v1499 = vmul.f32 %v1497, %v1498
    %v1500 = vlaneseq
    %v1501 = vshrl.u32 %v1500, 7
    %v1502 = vsub.s32 0, %v1501
    %v1503 = vrot.slane %v1422, %v1502
    %v1504 = vsub.f32 %v1326, %v1503
    %v1505 = vsub.f32 %v1327, %v1503
    %v1506 = vsub.f32 %v1328, %v1503
    %v1507 = vsub.f32 %v1329, %v1503
    %v1508 = vlaneseq
    %v1509 = vshrl.u32 %v1508, 7
    %v1510 = vsub.s32 0, %v1509
    %v1511 = vrot.slane %v1499, %v1510
    %v1512 = vmul.f32 %v1504, %v1511
    %v1513 = vmul.f32 %v1505, %v1511
    %v1514 = vmul.f32 %v1506, %v1511
    %v1515 = vmul.f32 %v1507, %v1511
    %v1516 = vld [vmem:[%s9] sm:$0x1]
    %v1518 = vlaneseq
    %v1519 = vshrl.u32 %v1518, 7
    %v1520 = vsub.s32 0, %v1519
    %v1521 = vrot.slane %v1516, %v1520
    %v1523 = vadd.f32 %v1512, %v1521
    %v1524 = vadd.f32 %v1513, %v1521
    %v1525 = vadd.f32 %v1514, %v1521
    %v1526 = vadd.f32 %v1515, %v1521
    %v1527 = vadd.f32 %v1523, %v118
    %v1528 = vadd.f32 %v1524, %v119
    %v1529 = vadd.f32 %v1525, %v120
    %v1530 = vadd.f32 %v1526, %v121
    %v1531 = vmax.f32 %v1527, 0.0
    %v1532 = vmax.f32 %v1528, 0.0
    %v1533 = vmax.f32 %v1529, 0.0
    %v1534 = vmax.f32 %v1530, 0.0
    %1535 = vst [vmem:[#allocation13] sm:$0xff] %v1531
    %1536 = vst [vmem:[#allocation13 + $0x8] sm:$0xff] %v1532
    %1537 = vst [vmem:[#allocation13 + $0x10] sm:$0xff] %v1533
    %1538 = vst [vmem:[#allocation13 + $0x18] sm:$0xff] %v1534
    // Predicated region
    $region66: #{tpu_custom_call.1} parent=1 // pred_check
      _
    $region67: #{tpu_custom_call.1} parent=1 // pred_check_branch
      %1540 = sbr.rel (0) target = $region69
    $region68: #{tpu_custom_call.1} parent=1 // pred_region
      %s1542 = ssub.s32 512, 512
      %1543 = vsyncadd [#allocation4], %s1542
      %s1544 = sshll.u32 [#allocation13], 4
      %s1545 = int_to_ptr.vmem [resolvable:$true] %s1544
      %1550 = dma.vmem_to_hbm [thread:$0]  %s1545, 512, %s10, [#allocation4], 128, 128, 8
    $region69: #{tpu_custom_call.1} parent=1 // pred_fallthru
      _
    // Predicated region
    $region70: #{tpu_custom_call.1} parent=1 // pred_check
      _
    $region71: #{tpu_custom_call.1} parent=1 // pred_check_branch
      %1552 = sbr.rel (0) target = $region73
    $region72: #{tpu_custom_call.1} parent=1 // pred_region
      %1553 = dma.done [#allocation4], 512
    $region73: #{tpu_custom_call.1} parent=1 // pred_fallthru
      _
    %1554 = vsyncpa [#allocation3], 1
    %1555 = vsyncpa [#allocation6], 1
    %1556 = vsyncpa [#allocation9], 1
    %1557 = vsyncpa [#allocation12], 1
    %1558 = vsyncpa [#allocation4], 1

</llo_original>
